<compile_context>
chip_gen: v5e
topology: v5e:2x2
jax: 0.10.0
libtpu: 0.0.40
codegen_flags: <defaults>
</compile_context>

<pallas_src>
import math
import functools

import jax
import jax.numpy as jnp
from jax import lax
from jax.experimental import pallas as pl
from jax.experimental.pallas import tpu as pltpu


# --------------------------------------------------------------------------
# Shared math helpers (used by the kernel and the plain-JAX reference so the
# bf16-MXU-operand convention is identical on both sides).
# --------------------------------------------------------------------------

def _dot(a, b):
    """MXU matmul: bf16 operands, f32 accumulation (native on v6e/v7x)."""
    return jnp.dot(a.astype(jnp.bfloat16), b.astype(jnp.bfloat16),
                   preferred_element_type=jnp.float32)


def _layernorm(x, gamma, beta, eps=1e-5):
    # Elementwise math stays in f32 (v5e VPU/EUP have no bf16 path).
    mean = jnp.mean(x, axis=-1, keepdims=True)
    var = jnp.mean((x - mean) ** 2, axis=-1, keepdims=True)  # biased, like torch
    return (x - mean) * jax.lax.rsqrt(var + eps) * gamma + beta


# --------------------------------------------------------------------------
# Pallas kernel: one batch element per grid step.
# --------------------------------------------------------------------------

def decoder_layer_kernel(x_ref, enc_ref, tgt_mask_ref, src_mask_ref,
                         w_qkv_s_ref, b_qkv_s_ref, wo_s_ref, bo_s_ref,
                         wq_c_ref, bq_c_ref, w_kv_c_ref, b_kv_c_ref,
                         wo_c_ref, bo_c_ref,
                         w1_ref, b1_ref, w2_ref, b2_ref,
                         gamma_ref, beta_ref,
                         out_ref, *, num_heads):
    f32, bf16 = jnp.float32, jnp.bfloat16
    x = x_ref[0].astype(f32)        # (S_t, D)  -- current batch element
    enc = enc_ref[0].astype(f32)    # (S_s, D)
    D = x.shape[-1]
    d_k = D // num_heads
    scale = 1.0 / math.sqrt(d_k)

    gamma = gamma_ref[...]
    beta = beta_ref[...]

    # Contract the d_k axis of BOTH operands (trans_b on the MXU) -> no .T,
    # no XLU transpose per head.
    dn_qk = (((1,), (1,)), ((), ()))

    def mha(q, k, v, mask, wo_ref_, bo_ref_):
        # q: (s_q, D) f32; k, v: (s_kv, D) f32; mask: (s_q, s_kv) f32.
        # One bf16 cast per tensor; head outputs stay register-resident and are
        # concatenated for a single full-depth (K=D) W_o matmul.
        # TODO(synk): for larger H*d_k, batch heads in one dot_general instead
        # of the static per-head unroll (fine at H=4).
        qb, kb, vb = q.astype(bf16), k.astype(bf16), v.astype(bf16)
        heads = []
        for h in range(num_heads):
            c = slice(h * d_k, (h + 1) * d_k)
            s = lax.dot_general(qb[:, c], kb[:, c], dn_qk,
                                preferred_element_type=f32) * scale
            s = jnp.where(mask == 0.0, -1e9, s)          # == masked_fill
            m = jnp.max(s, axis=-1, keepdims=True)
            e = jnp.exp(s - m)
            p = e / jnp.sum(e, axis=-1, keepdims=True)   # exact softmax
            heads.append(jnp.dot(p.astype(bf16), vb[:, c],
                                 preferred_element_type=f32))
        heads_cat = jnp.concatenate(heads, axis=-1)      # (s_q, D), registers
        return jnp.dot(heads_cat.astype(bf16), wo_ref_[...],
                       preferred_element_type=f32) + bo_ref_[...]

    # ---- self-attention (fused QKV projection: one (D, 3D) MXU pass) ----
    qkv = jnp.dot(x.astype(bf16), w_qkv_s_ref[...],
                  preferred_element_type=f32) + b_qkv_s_ref[...]
    attn = mha(qkv[:, :D], qkv[:, D:2 * D], qkv[:, 2 * D:],
               tgt_mask_ref[...], wo_s_ref, bo_s_ref)
    x = _layernorm(x + attn, gamma[0:1, :], beta[0:1, :])

    # ---- cross-attention (fused KV projection on encoder output) ----
    q = jnp.dot(x.astype(bf16), wq_c_ref[...],
                preferred_element_type=f32) + bq_c_ref[...]
    kv = jnp.dot(enc.astype(bf16), w_kv_c_ref[...],
                 preferred_element_type=f32) + b_kv_c_ref[...]
    attn = mha(q, kv[:, :D], kv[:, D:],
               src_mask_ref[...], wo_c_ref, bo_c_ref)
    x = _layernorm(x + attn, gamma[1:2, :], beta[1:2, :])

    # ---- position-wise feed-forward ----
    h = jnp.maximum(jnp.dot(x.astype(bf16), w1_ref[...],
                            preferred_element_type=f32) + b1_ref[...], 0.0)
    ff = jnp.dot(h.astype(bf16), w2_ref[...],
                 preferred_element_type=f32) + b2_ref[...]
    x = _layernorm(x + ff, gamma[2:3, :], beta[2:3, :])

    # TODO(synk): nn.Dropout is modeled as identity (eval mode); stochastic
    # training-mode dropout would need pltpu.prng_seed / prng_random_bits.
    out_ref[...] = x[None, :, :].astype(out_ref.dtype)


# --------------------------------------------------------------------------
# Wrapper: packs weights, builds BlockSpecs, one parallel grid axis over batch.
# --------------------------------------------------------------------------

def decoder_layer_pallas(x, enc_output, tgt_mask, src_mask, params, num_heads):
    B, S_t, D = x.shape
    _, S_s, _ = enc_output.shape
    assert D % num_heads == 0, "d_model must be divisible by num_heads"

    sa, ca, ff, ln = params["self_attn"], params["cross_attn"], params["ffn"], params["ln"]
    wdt = jnp.bfloat16   # MXU operand dtype (bf16-native on v6e/v7x; halves weight DMA)

    # Fused / packed weights (already (in, out) layout so y = x @ W + b).
    w_qkv_s = jnp.concatenate([sa["wq"], sa["wk"], sa["wv"]], axis=1).astype(wdt)
    b_qkv_s = jnp.concatenate([sa["bq"], sa["bk"], sa["bv"]])[None, :].astype(jnp.float32)
    wo_s, bo_s = sa["wo"].astype(wdt), sa["bo"][None, :].astype(jnp.float32)

    wq_c, bq_c = ca["wq"].astype(wdt), ca["bq"][None, :].astype(jnp.float32)
    w_kv_c = jnp.concatenate([ca["wk"], ca["wv"]], axis=1).astype(wdt)
    b_kv_c = jnp.concatenate([ca["bk"], ca["bv"]])[None, :].astype(jnp.float32)
    wo_c, bo_c = ca["wo"].astype(wdt), ca["bo"][None, :].astype(jnp.float32)

    w1, b1 = ff["w1"].astype(wdt), ff["b1"][None, :].astype(jnp.float32)
    w2, b2 = ff["w2"].astype(wdt), ff["b2"][None, :].astype(jnp.float32)
    gamma, beta = ln["gamma"].astype(jnp.float32), ln["beta"].astype(jnp.float32)

    tgt_mask_f = tgt_mask.astype(jnp.float32)
    src_mask_f = src_mask.astype(jnp.float32)

    batched = (x, enc_output)
    invariant = (tgt_mask_f, src_mask_f,
                 w_qkv_s, b_qkv_s, wo_s, bo_s,
                 wq_c, bq_c, w_kv_c, b_kv_c, wo_c, bo_c,
                 w1, b1, w2, b2, gamma, beta)

    def batch_spec(seq, depth):
        return pl.BlockSpec((1, seq, depth), lambda b: (b, 0, 0))

    def invariant_spec(a):
        # Grid-invariant full block (weights, biases, masks, LN params).
        # TODO(synk): once a real multi-step grid exists, add
        # pipeline_mode=pl.Buffered(1) here to avoid double-buffering weights.
        zeros = (0,) * a.ndim
        return pl.BlockSpec(a.shape, lambda b, _z=zeros: _z)

    kernel = functools.partial(decoder_layer_kernel, num_heads=num_heads)

    out = pl.pallas_call(
        kernel,
        out_shape=jax.ShapeDtypeStruct((B, S_t, D), x.dtype),
        grid_spec=pltpu.PrefetchScalarGridSpec(
            num_scalar_prefetch=0,
            grid=(B,),
            in_specs=[batch_spec(S_t, D), batch_spec(S_s, D)]
                     + [invariant_spec(a) for a in invariant],
            out_specs=pl.BlockSpec((1, S_t, D), lambda b: (b, 0, 0)),
        ),
        compiler_params=pltpu.CompilerParams(
            # Batch axis is independent -> megacore-shardable on v7x.
            dimension_semantics=("parallel",),
            # Explicit scoped-VMEM limit; 64 MiB is within physical VMEM on
            # every generation (v5e/v6e 128 MiB, v7x 64 MiB).
            vmem_limit_bytes=64 * 1024 * 1024,
        ),
    )(*batched, *invariant)
    return out


# --------------------------------------------------------------------------
# Plain-JAX reference (mirrors PyTorch semantics; uses the same bf16-operand
# matmul convention so the comparison isolates kernel-specific numerics).
# --------------------------------------------------------------------------

def decoder_layer_ref(x, enc_output, tgt_mask, src_mask, params, num_heads):
    D = x.shape[-1]
    d_k = D // num_heads
    scale = 1.0 / math.sqrt(d_k)
    ln, ff = params["ln"], params["ffn"]

    def mha(xq, xkv, w, mask):
        q = _dot(xq, w["wq"]) + w["bq"]
        k = _dot(xkv, w["wk"]) + w["bk"]
        v = _dot(xkv, w["wv"]) + w["bv"]
        heads = []
        for h in range(num_heads):
            sl = slice(h * d_k, (h + 1) * d_k)
            s = _dot(q[:, sl], k[:, sl].T) * scale
            s = jnp.where(mask == 0, -1e9, s)
            p = jax.nn.softmax(s, axis=-1)
            heads.append(_dot(p, v[:, sl]))
        return _dot(jnp.concatenate(heads, axis=-1), w["wo"]) + w["bo"]

    def one(xb, encb):
        a = mha(xb, xb, params["self_attn"], tgt_mask)
        xb = _layernorm(xb + a, ln["gamma"][0], ln["beta"][0])
        a = mha(xb, encb, params["cross_attn"], src_mask)
        xb = _layernorm(xb + a, ln["gamma"][1], ln["beta"][1])
        h = jnp.maximum(_dot(xb, ff["w1"]) + ff["b1"], 0.0)
        f = _dot(h, ff["w2"]) + ff["b2"]
        return _layernorm(xb + f, ln["gamma"][2], ln["beta"][2])

    return jax.vmap(one)(x, enc_output)


# --------------------------------------------------------------------------
# Driver
# --------------------------------------------------------------------------

if __name__ == "__main__":
    B, S_T, S_S = 2, 8, 8
    D_MODEL, NUM_HEADS, D_FF = 32, 4, 64

    key = jax.random.PRNGKey(0)
    keys = jax.random.split(key, 8)

    def lin(kw, kb, fan_in, fan_out):
        # nn.Linear weights pre-transposed to (in, out) so y = x @ W + b.
        w = jax.random.normal(kw, (fan_in, fan_out), jnp.float32) * 0.1
        b = jax.random.normal(kb, (fan_out,), jnp.float32) * 0.1
        return w, b

    def mha_params(k8):
        ks = jax.random.split(k8, 8)
        wq, bq = lin(ks[0], ks[1], D_MODEL, D_MODEL)
        wk, bk = lin(ks[2], ks[3], D_MODEL, D_MODEL)
        wv, bv = lin(ks[4], ks[5], D_MODEL, D_MODEL)
        wo, bo = lin(ks[6], ks[7], D_MODEL, D_MODEL)
        return dict(wq=wq, bq=bq, wk=wk, bk=bk, wv=wv, bv=bv, wo=wo, bo=bo)

    w1, b1 = lin(keys[2], keys[3], D_MODEL, D_FF)
    w2, b2 = lin(keys[4], keys[5], D_FF, D_MODEL)

    params = {
        "self_attn": mha_params(keys[0]),
        "cross_attn": mha_params(keys[1]),
        "ffn": dict(w1=w1, b1=b1, w2=w2, b2=b2),
        "ln": dict(gamma=jnp.ones((3, D_MODEL), jnp.float32),
                   beta=jnp.zeros((3, D_MODEL), jnp.float32)),
    }

    x = jax.random.normal(keys[6], (B, S_T, D_MODEL), jnp.float32)
    enc_output = jax.random.normal(keys[7], (B, S_S, D_MODEL), jnp.float32)

    tgt_mask = jnp.tril(jnp.ones((S_T, S_T), jnp.float32))  # causal
    src_mask = jnp.ones((S_T, S_S), jnp.float32)            # full cross-attention

    out = decoder_layer_pallas(x, enc_output, tgt_mask, src_mask, params, NUM_HEADS)
    out = jax.block_until_ready(out)

    ref = decoder_layer_ref(x, enc_output, tgt_mask, src_mask, params, NUM_HEADS)
    # Tolerance covers bf16 MXU operands (exact softmax / f32 scaling now
    # match the reference path).
    assert jnp.allclose(out, ref, atol=2e-2, rtol=2e-2), "Pallas kernel mismatch vs JAX reference"

    print("KERNEL_OK")
</pallas_src>

<mosaic_0001>
module attributes {stable_mosaic.version = 11 : i64} {
  func.func @decoder_layer_kernel(%arg0: i32, %arg1: memref<1x8x32xf32, #tpu.memory_space<vmem>>, %arg2: memref<1x8x32xf32, #tpu.memory_space<vmem>>, %arg3: memref<8x8xf32, #tpu.memory_space<vmem>>, %arg4: memref<8x8xf32, #tpu.memory_space<vmem>>, %arg5: memref<32x96xbf16, #tpu.memory_space<vmem>>, %arg6: memref<1x96xf32, #tpu.memory_space<vmem>>, %arg7: memref<32x32xbf16, #tpu.memory_space<vmem>>, %arg8: memref<1x32xf32, #tpu.memory_space<vmem>>, %arg9: memref<32x32xbf16, #tpu.memory_space<vmem>>, %arg10: memref<1x32xf32, #tpu.memory_space<vmem>>, %arg11: memref<32x64xbf16, #tpu.memory_space<vmem>>, %arg12: memref<1x64xf32, #tpu.memory_space<vmem>>, %arg13: memref<32x32xbf16, #tpu.memory_space<vmem>>, %arg14: memref<1x32xf32, #tpu.memory_space<vmem>>, %arg15: memref<32x64xbf16, #tpu.memory_space<vmem>>, %arg16: memref<1x64xf32, #tpu.memory_space<vmem>>, %arg17: memref<64x32xbf16, #tpu.memory_space<vmem>>, %arg18: memref<1x32xf32, #tpu.memory_space<vmem>>, %arg19: memref<3x32xf32, #tpu.memory_space<vmem>>, %arg20: memref<3x32xf32, #tpu.memory_space<vmem>>, %arg21: memref<1x8x32xf32, #tpu.memory_space<vmem>>) attributes {dimension_semantics = [#tpu.dimension_semantics<parallel>], iteration_bounds = array<i64: 2>, scalar_prefetch = 0 : i64, scratch_operands = 0 : i64, tpu.core_type = #tpu.core_type<tc>, window_params = [{transform_indices = @transform_0, window_bounds = array<i64: 1, 8, 32>}, {transform_indices = @transform_1, window_bounds = array<i64: 1, 8, 32>}, {pipeline_mode = #tpu.pipeline_mode<synchronous>, transform_indices = @transform_2, window_bounds = array<i64: 8, 8>}, {pipeline_mode = #tpu.pipeline_mode<synchronous>, transform_indices = @transform_3, window_bounds = array<i64: 8, 8>}, {pipeline_mode = #tpu.pipeline_mode<synchronous>, transform_indices = @transform_4, window_bounds = array<i64: 32, 96>}, {pipeline_mode = #tpu.pipeline_mode<synchronous>, transform_indices = @transform_5, window_bounds = array<i64: 1, 96>}, {pipeline_mode = #tpu.pipeline_mode<synchronous>, transform_indices = @transform_6, window_bounds = array<i64: 32, 32>}, {pipeline_mode = #tpu.pipeline_mode<synchronous>, transform_indices = @transform_7, window_bounds = array<i64: 1, 32>}, {pipeline_mode = #tpu.pipeline_mode<synchronous>, transform_indices = @transform_8, window_bounds = array<i64: 32, 32>}, {pipeline_mode = #tpu.pipeline_mode<synchronous>, transform_indices = @transform_9, window_bounds = array<i64: 1, 32>}, {pipeline_mode = #tpu.pipeline_mode<synchronous>, transform_indices = @transform_10, window_bounds = array<i64: 32, 64>}, {pipeline_mode = #tpu.pipeline_mode<synchronous>, transform_indices = @transform_11, window_bounds = array<i64: 1, 64>}, {pipeline_mode = #tpu.pipeline_mode<synchronous>, transform_indices = @transform_12, window_bounds = array<i64: 32, 32>}, {pipeline_mode = #tpu.pipeline_mode<synchronous>, transform_indices = @transform_13, window_bounds = array<i64: 1, 32>}, {pipeline_mode = #tpu.pipeline_mode<synchronous>, transform_indices = @transform_14, window_bounds = array<i64: 32, 64>}, {pipeline_mode = #tpu.pipeline_mode<synchronous>, transform_indices = @transform_15, window_bounds = array<i64: 1, 64>}, {pipeline_mode = #tpu.pipeline_mode<synchronous>, transform_indices = @transform_16, window_bounds = array<i64: 64, 32>}, {pipeline_mode = #tpu.pipeline_mode<synchronous>, transform_indices = @transform_17, window_bounds = array<i64: 1, 32>}, {pipeline_mode = #tpu.pipeline_mode<synchronous>, transform_indices = @transform_18, window_bounds = array<i64: 3, 32>}, {pipeline_mode = #tpu.pipeline_mode<synchronous>, transform_indices = @transform_19, window_bounds = array<i64: 3, 32>}, {transform_indices = @transform_20, window_bounds = array<i64: 1, 8, 32>}]} {
    %c0 = arith.constant 0 : index
    %c0_0 = arith.constant 0 : index
    %c0_1 = arith.constant 0 : index
    %0 = vector.load %arg1[%c0, %c0_0, %c0_1] : memref<1x8x32xf32, #tpu.memory_space<vmem>>, vector<1x8x32xf32>
    %1 = vector.shape_cast %0 : vector<1x8x32xf32> to vector<8x32xf32>
    %c0_2 = arith.constant 0 : index
    %c0_3 = arith.constant 0 : index
    %c0_4 = arith.constant 0 : index
    %2 = vector.load %arg2[%c0_2, %c0_3, %c0_4] : memref<1x8x32xf32, #tpu.memory_space<vmem>>, vector<1x8x32xf32>
    %3 = vector.shape_cast %2 : vector<1x8x32xf32> to vector<8x32xf32>
    %c0_5 = arith.constant 0 : index
    %c0_6 = arith.constant 0 : index
    %4 = vector.load %arg19[%c0_5, %c0_6] : memref<3x32xf32, #tpu.memory_space<vmem>>, vector<3x32xf32>
    %c0_7 = arith.constant 0 : index
    %c0_8 = arith.constant 0 : index
    %5 = vector.load %arg20[%c0_7, %c0_8] : memref<3x32xf32, #tpu.memory_space<vmem>>, vector<3x32xf32>
    %6 = arith.truncf %1 : vector<8x32xf32> to vector<8x32xbf16>
    %c0_9 = arith.constant 0 : index
    %c0_10 = arith.constant 0 : index
    %7 = vector.load %arg5[%c0_9, %c0_10] : memref<32x96xbf16, #tpu.memory_space<vmem>>, vector<32x96xbf16>
    %cst = arith.constant dense<0.000000e+00> : vector<8x96xf32>
    %8 = tpu.matmul %6, %7, %cst {dimension_numbers = #tpu.dot_dimension_numbers<[1], [0], [0], [1], [0, 0, 1, 1], [], []>} : vector<8x32xbf16>, vector<32x96xbf16>, vector<8x96xf32> -> vector<8x96xf32>
    %c0_11 = arith.constant 0 : index
    %c0_12 = arith.constant 0 : index
    %9 = vector.load %arg6[%c0_11, %c0_12] : memref<1x96xf32, #tpu.memory_space<vmem>>, vector<1x96xf32>
    %10 = vector.broadcast %9 : vector<1x96xf32> to vector<8x96xf32>
    %11 = arith.addf %8, %10 : vector<8x96xf32>
    %12 = vector.extract_strided_slice %11 {offsets = [0, 0], sizes = [8, 32], strides = [1, 1]} : vector<8x96xf32> to vector<8x32xf32>
    %13 = vector.extract_strided_slice %11 {offsets = [0, 32], sizes = [8, 32], strides = [1, 1]} : vector<8x96xf32> to vector<8x32xf32>
    %14 = vector.extract_strided_slice %11 {offsets = [0, 64], sizes = [8, 32], strides = [1, 1]} : vector<8x96xf32> to vector<8x32xf32>
    %c0_13 = arith.constant 0 : index
    %c0_14 = arith.constant 0 : index
    %15 = vector.load %arg3[%c0_13, %c0_14] : memref<8x8xf32, #tpu.memory_space<vmem>>, vector<8x8xf32>
    %16 = arith.truncf %12 : vector<8x32xf32> to vector<8x32xbf16>
    %17 = arith.truncf %13 : vector<8x32xf32> to vector<8x32xbf16>
    %18 = arith.truncf %14 : vector<8x32xf32> to vector<8x32xbf16>
    %19 = vector.extract_strided_slice %16 {offsets = [0, 0], sizes = [8, 8], strides = [1, 1]} : vector<8x32xbf16> to vector<8x8xbf16>
    %20 = vector.extract_strided_slice %17 {offsets = [0, 0], sizes = [8, 8], strides = [1, 1]} : vector<8x32xbf16> to vector<8x8xbf16>
    %cst_15 = arith.constant dense<0.000000e+00> : vector<8x8xf32>
    %21 = tpu.matmul %19, %20, %cst_15 {dimension_numbers = #tpu.dot_dimension_numbers<[1], [1], [0], [0], [0, 0, 1, 0], [], []>} : vector<8x8xbf16>, vector<8x8xbf16>, vector<8x8xf32> -> vector<8x8xf32>
    %cst_16 = arith.constant 0.353553385 : f32
    %22 = vector.broadcast %cst_16 : f32 to vector<8x8xf32>
    %23 = arith.mulf %21, %22 : vector<8x8xf32>
    %cst_17 = arith.constant 0.000000e+00 : f32
    %24 = vector.broadcast %cst_17 : f32 to vector<8x8xf32>
    %25 = arith.cmpf oeq, %15, %24 : vector<8x8xf32>
    %cst_18 = arith.constant -1.000000e+09 : f32
    %26 = vector.broadcast %cst_18 : f32 to vector<8x8xf32>
    %27 = arith.select %25, %26, %23 : vector<8x8xi1>, vector<8x8xf32>
    %cst_19 = arith.constant dense<0xFF800000> : vector<8xf32>
    %28 = vector.multi_reduction <maximumf>, %27, %cst_19 [1] : vector<8x8xf32> to vector<8xf32>
    %29 = vector.shape_cast %28 : vector<8xf32> to vector<8x1xf32>
    %30 = vector.broadcast %29 : vector<8x1xf32> to vector<8x8xf32>
    %31 = arith.subf %27, %30 : vector<8x8xf32>
    %32 = math.exp %31 : vector<8x8xf32>
    %cst_20 = arith.constant dense<0.000000e+00> : vector<8xf32>
    %33 = vector.multi_reduction <add>, %32, %cst_20 [1] : vector<8x8xf32> to vector<8xf32>
    %34 = vector.shape_cast %33 : vector<8xf32> to vector<8x1xf32>
    %35 = vector.broadcast %34 : vector<8x1xf32> to vector<8x8xf32>
    %36 = arith.divf %32, %35 : vector<8x8xf32>
    %37 = arith.truncf %36 : vector<8x8xf32> to vector<8x8xbf16>
    %38 = vector.extract_strided_slice %18 {offsets = [0, 0], sizes = [8, 8], strides = [1, 1]} : vector<8x32xbf16> to vector<8x8xbf16>
    %cst_21 = arith.constant dense<0.000000e+00> : vector<8x8xf32>
    %39 = tpu.matmul %37, %38, %cst_21 {dimension_numbers = #tpu.dot_dimension_numbers<[1], [0], [0], [1], [0, 0, 1, 1], [], []>} : vector<8x8xbf16>, vector<8x8xbf16>, vector<8x8xf32> -> vector<8x8xf32>
    %40 = vector.extract_strided_slice %16 {offsets = [0, 8], sizes = [8, 8], strides = [1, 1]} : vector<8x32xbf16> to vector<8x8xbf16>
    %41 = vector.extract_strided_slice %17 {offsets = [0, 8], sizes = [8, 8], strides = [1, 1]} : vector<8x32xbf16> to vector<8x8xbf16>
    %cst_22 = arith.constant dense<0.000000e+00> : vector<8x8xf32>
    %42 = tpu.matmul %40, %41, %cst_22 {dimension_numbers = #tpu.dot_dimension_numbers<[1], [1], [0], [0], [0, 0, 1, 0], [], []>} : vector<8x8xbf16>, vector<8x8xbf16>, vector<8x8xf32> -> vector<8x8xf32>
    %cst_23 = arith.constant 0.353553385 : f32
    %43 = vector.broadcast %cst_23 : f32 to vector<8x8xf32>
    %44 = arith.mulf %42, %43 : vector<8x8xf32>
    %cst_24 = arith.constant 0.000000e+00 : f32
    %45 = vector.broadcast %cst_24 : f32 to vector<8x8xf32>
    %46 = arith.cmpf oeq, %15, %45 : vector<8x8xf32>
    %cst_25 = arith.constant -1.000000e+09 : f32
    %47 = vector.broadcast %cst_25 : f32 to vector<8x8xf32>
    %48 = arith.select %46, %47, %44 : vector<8x8xi1>, vector<8x8xf32>
    %cst_26 = arith.constant dense<0xFF800000> : vector<8xf32>
    %49 = vector.multi_reduction <maximumf>, %48, %cst_26 [1] : vector<8x8xf32> to vector<8xf32>
    %50 = vector.shape_cast %49 : vector<8xf32> to vector<8x1xf32>
    %51 = vector.broadcast %50 : vector<8x1xf32> to vector<8x8xf32>
    %52 = arith.subf %48, %51 : vector<8x8xf32>
    %53 = math.exp %52 : vector<8x8xf32>
    %cst_27 = arith.constant dense<0.000000e+00> : vector<8xf32>
    %54 = vector.multi_reduction <add>, %53, %cst_27 [1] : vector<8x8xf32> to vector<8xf32>
    %55 = vector.shape_cast %54 : vector<8xf32> to vector<8x1xf32>
    %56 = vector.broadcast %55 : vector<8x1xf32> to vector<8x8xf32>
    %57 = arith.divf %53, %56 : vector<8x8xf32>
    %58 = arith.truncf %57 : vector<8x8xf32> to vector<8x8xbf16>
    %59 = vector.extract_strided_slice %18 {offsets = [0, 8], sizes = [8, 8], strides = [1, 1]} : vector<8x32xbf16> to vector<8x8xbf16>
    %cst_28 = arith.constant dense<0.000000e+00> : vector<8x8xf32>
    %60 = tpu.matmul %58, %59, %cst_28 {dimension_numbers = #tpu.dot_dimension_numbers<[1], [0], [0], [1], [0, 0, 1, 1], [], []>} : vector<8x8xbf16>, vector<8x8xbf16>, vector<8x8xf32> -> vector<8x8xf32>
    %61 = vector.extract_strided_slice %16 {offsets = [0, 16], sizes = [8, 8], strides = [1, 1]} : vector<8x32xbf16> to vector<8x8xbf16>
    %62 = vector.extract_strided_slice %17 {offsets = [0, 16], sizes = [8, 8], strides = [1, 1]} : vector<8x32xbf16> to vector<8x8xbf16>
    %cst_29 = arith.constant dense<0.000000e+00> : vector<8x8xf32>
    %63 = tpu.matmul %61, %62, %cst_29 {dimension_numbers = #tpu.dot_dimension_numbers<[1], [1], [0], [0], [0, 0, 1, 0], [], []>} : vector<8x8xbf16>, vector<8x8xbf16>, vector<8x8xf32> -> vector<8x8xf32>
    %cst_30 = arith.constant 0.353553385 : f32
    %64 = vector.broadcast %cst_30 : f32 to vector<8x8xf32>
    %65 = arith.mulf %63, %64 : vector<8x8xf32>
    %cst_31 = arith.constant 0.000000e+00 : f32
    %66 = vector.broadcast %cst_31 : f32 to vector<8x8xf32>
    %67 = arith.cmpf oeq, %15, %66 : vector<8x8xf32>
    %cst_32 = arith.constant -1.000000e+09 : f32
    %68 = vector.broadcast %cst_32 : f32 to vector<8x8xf32>
    %69 = arith.select %67, %68, %65 : vector<8x8xi1>, vector<8x8xf32>
    %cst_33 = arith.constant dense<0xFF800000> : vector<8xf32>
    %70 = vector.multi_reduction <maximumf>, %69, %cst_33 [1] : vector<8x8xf32> to vector<8xf32>
    %71 = vector.shape_cast %70 : vector<8xf32> to vector<8x1xf32>
    %72 = vector.broadcast %71 : vector<8x1xf32> to vector<8x8xf32>
    %73 = arith.subf %69, %72 : vector<8x8xf32>
    %74 = math.exp %73 : vector<8x8xf32>
    %cst_34 = arith.constant dense<0.000000e+00> : vector<8xf32>
    %75 = vector.multi_reduction <add>, %74, %cst_34 [1] : vector<8x8xf32> to vector<8xf32>
    %76 = vector.shape_cast %75 : vector<8xf32> to vector<8x1xf32>
    %77 = vector.broadcast %76 : vector<8x1xf32> to vector<8x8xf32>
    %78 = arith.divf %74, %77 : vector<8x8xf32>
    %79 = arith.truncf %78 : vector<8x8xf32> to vector<8x8xbf16>
    %80 = vector.extract_strided_slice %18 {offsets = [0, 16], sizes = [8, 8], strides = [1, 1]} : vector<8x32xbf16> to vector<8x8xbf16>
    %cst_35 = arith.constant dense<0.000000e+00> : vector<8x8xf32>
    %81 = tpu.matmul %79, %80, %cst_35 {dimension_numbers = #tpu.dot_dimension_numbers<[1], [0], [0], [1], [0, 0, 1, 1], [], []>} : vector<8x8xbf16>, vector<8x8xbf16>, vector<8x8xf32> -> vector<8x8xf32>
    %82 = vector.extract_strided_slice %16 {offsets = [0, 24], sizes = [8, 8], strides = [1, 1]} : vector<8x32xbf16> to vector<8x8xbf16>
    %83 = vector.extract_strided_slice %17 {offsets = [0, 24], sizes = [8, 8], strides = [1, 1]} : vector<8x32xbf16> to vector<8x8xbf16>
    %cst_36 = arith.constant dense<0.000000e+00> : vector<8x8xf32>
    %84 = tpu.matmul %82, %83, %cst_36 {dimension_numbers = #tpu.dot_dimension_numbers<[1], [1], [0], [0], [0, 0, 1, 0], [], []>} : vector<8x8xbf16>, vector<8x8xbf16>, vector<8x8xf32> -> vector<8x8xf32>
    %cst_37 = arith.constant 0.353553385 : f32
    %85 = vector.broadcast %cst_37 : f32 to vector<8x8xf32>
    %86 = arith.mulf %84, %85 : vector<8x8xf32>
    %cst_38 = arith.constant 0.000000e+00 : f32
    %87 = vector.broadcast %cst_38 : f32 to vector<8x8xf32>
    %88 = arith.cmpf oeq, %15, %87 : vector<8x8xf32>
    %cst_39 = arith.constant -1.000000e+09 : f32
    %89 = vector.broadcast %cst_39 : f32 to vector<8x8xf32>
    %90 = arith.select %88, %89, %86 : vector<8x8xi1>, vector<8x8xf32>
    %cst_40 = arith.constant dense<0xFF800000> : vector<8xf32>
    %91 = vector.multi_reduction <maximumf>, %90, %cst_40 [1] : vector<8x8xf32> to vector<8xf32>
    %92 = vector.shape_cast %91 : vector<8xf32> to vector<8x1xf32>
    %93 = vector.broadcast %92 : vector<8x1xf32> to vector<8x8xf32>
    %94 = arith.subf %90, %93 : vector<8x8xf32>
    %95 = math.exp %94 : vector<8x8xf32>
    %cst_41 = arith.constant dense<0.000000e+00> : vector<8xf32>
    %96 = vector.multi_reduction <add>, %95, %cst_41 [1] : vector<8x8xf32> to vector<8xf32>
    %97 = vector.shape_cast %96 : vector<8xf32> to vector<8x1xf32>
    %98 = vector.broadcast %97 : vector<8x1xf32> to vector<8x8xf32>
    %99 = arith.divf %95, %98 : vector<8x8xf32>
    %100 = arith.truncf %99 : vector<8x8xf32> to vector<8x8xbf16>
    %101 = vector.extract_strided_slice %18 {offsets = [0, 24], sizes = [8, 8], strides = [1, 1]} : vector<8x32xbf16> to vector<8x8xbf16>
    %cst_42 = arith.constant dense<0.000000e+00> : vector<8x8xf32>
    %102 = tpu.matmul %100, %101, %cst_42 {dimension_numbers = #tpu.dot_dimension_numbers<[1], [0], [0], [1], [0, 0, 1, 1], [], []>} : vector<8x8xbf16>, vector<8x8xbf16>, vector<8x8xf32> -> vector<8x8xf32>
    %103 = tpu.concatenate %39, %60, %81, %102 in 1 : vector<8x8xf32>, vector<8x8xf32>, vector<8x8xf32>, vector<8x8xf32> -> vector<8x32xf32>
    %104 = arith.truncf %103 : vector<8x32xf32> to vector<8x32xbf16>
    %c0_43 = arith.constant 0 : index
    %c0_44 = arith.constant 0 : index
    %105 = vector.load %arg7[%c0_43, %c0_44] : memref<32x32xbf16, #tpu.memory_space<vmem>>, vector<32x32xbf16>
    %cst_45 = arith.constant dense<0.000000e+00> : vector<8x32xf32>
    %106 = tpu.matmul %104, %105, %cst_45 {dimension_numbers = #tpu.dot_dimension_numbers<[1], [0], [0], [1], [0, 0, 1, 1], [], []>} : vector<8x32xbf16>, vector<32x32xbf16>, vector<8x32xf32> -> vector<8x32xf32>
    %c0_46 = arith.constant 0 : index
    %c0_47 = arith.constant 0 : index
    %107 = vector.load %arg8[%c0_46, %c0_47] : memref<1x32xf32, #tpu.memory_space<vmem>>, vector<1x32xf32>
    %108 = vector.broadcast %107 : vector<1x32xf32> to vector<8x32xf32>
    %109 = arith.addf %106, %108 : vector<8x32xf32>
    %110 = arith.addf %1, %109 : vector<8x32xf32>
    %111 = vector.extract_strided_slice %4 {offsets = [0, 0], sizes = [1, 32], strides = [1, 1]} : vector<3x32xf32> to vector<1x32xf32>
    %112 = vector.extract_strided_slice %5 {offsets = [0, 0], sizes = [1, 32], strides = [1, 1]} : vector<3x32xf32> to vector<1x32xf32>
    %cst_48 = arith.constant dense<0.000000e+00> : vector<8xf32>
    %113 = vector.multi_reduction <add>, %110, %cst_48 [1] : vector<8x32xf32> to vector<8xf32>
    %114 = vector.shape_cast %113 : vector<8xf32> to vector<8x1xf32>
    %cst_49 = arith.constant 3.200000e+01 : f32
    %115 = vector.broadcast %cst_49 : f32 to vector<8x1xf32>
    %116 = arith.divf %114, %115 : vector<8x1xf32>
    %117 = vector.broadcast %116 : vector<8x1xf32> to vector<8x32xf32>
    %118 = arith.subf %110, %117 : vector<8x32xf32>
    %119 = arith.mulf %118, %118 : vector<8x32xf32>
    %cst_50 = arith.constant dense<0.000000e+00> : vector<8xf32>
    %120 = vector.multi_reduction <add>, %119, %cst_50 [1] : vector<8x32xf32> to vector<8xf32>
    %121 = vector.shape_cast %120 : vector<8xf32> to vector<8x1xf32>
    %cst_51 = arith.constant 3.200000e+01 : f32
    %122 = vector.broadcast %cst_51 : f32 to vector<8x1xf32>
    %123 = arith.divf %121, %122 : vector<8x1xf32>
    %124 = vector.broadcast %116 : vector<8x1xf32> to vector<8x32xf32>
    %125 = arith.subf %110, %124 : vector<8x32xf32>
    %cst_52 = arith.constant 9.99999974E-6 : f32
    %126 = vector.broadcast %cst_52 : f32 to vector<8x1xf32>
    %127 = arith.addf %123, %126 : vector<8x1xf32>
    %128 = math.rsqrt %127 : vector<8x1xf32>
    %129 = vector.broadcast %128 : vector<8x1xf32> to vector<8x32xf32>
    %130 = arith.mulf %125, %129 : vector<8x32xf32>
    %131 = vector.broadcast %111 : vector<1x32xf32> to vector<8x32xf32>
    %132 = arith.mulf %130, %131 : vector<8x32xf32>
    %133 = vector.broadcast %112 : vector<1x32xf32> to vector<8x32xf32>
    %134 = arith.addf %132, %133 : vector<8x32xf32>
    %135 = arith.truncf %134 : vector<8x32xf32> to vector<8x32xbf16>
    %c0_53 = arith.constant 0 : index
    %c0_54 = arith.constant 0 : index
    %136 = vector.load %arg9[%c0_53, %c0_54] : memref<32x32xbf16, #tpu.memory_space<vmem>>, vector<32x32xbf16>
    %cst_55 = arith.constant dense<0.000000e+00> : vector<8x32xf32>
    %137 = tpu.matmul %135, %136, %cst_55 {dimension_numbers = #tpu.dot_dimension_numbers<[1], [0], [0], [1], [0, 0, 1, 1], [], []>} : vector<8x32xbf16>, vector<32x32xbf16>, vector<8x32xf32> -> vector<8x32xf32>
    %c0_56 = arith.constant 0 : index
    %c0_57 = arith.constant 0 : index
    %138 = vector.load %arg10[%c0_56, %c0_57] : memref<1x32xf32, #tpu.memory_space<vmem>>, vector<1x32xf32>
    %139 = vector.broadcast %138 : vector<1x32xf32> to vector<8x32xf32>
    %140 = arith.addf %137, %139 : vector<8x32xf32>
    %141 = arith.truncf %3 : vector<8x32xf32> to vector<8x32xbf16>
    %c0_58 = arith.constant 0 : index
    %c0_59 = arith.constant 0 : index
    %142 = vector.load %arg11[%c0_58, %c0_59] : memref<32x64xbf16, #tpu.memory_space<vmem>>, vector<32x64xbf16>
    %cst_60 = arith.constant dense<0.000000e+00> : vector<8x64xf32>
    %143 = tpu.matmul %141, %142, %cst_60 {dimension_numbers = #tpu.dot_dimension_numbers<[1], [0], [0], [1], [0, 0, 1, 1], [], []>} : vector<8x32xbf16>, vector<32x64xbf16>, vector<8x64xf32> -> vector<8x64xf32>
    %c0_61 = arith.constant 0 : index
    %c0_62 = arith.constant 0 : index
    %144 = vector.load %arg12[%c0_61, %c0_62] : memref<1x64xf32, #tpu.memory_space<vmem>>, vector<1x64xf32>
    %145 = vector.broadcast %144 : vector<1x64xf32> to vector<8x64xf32>
    %146 = arith.addf %143, %145 : vector<8x64xf32>
    %147 = vector.extract_strided_slice %146 {offsets = [0, 0], sizes = [8, 32], strides = [1, 1]} : vector<8x64xf32> to vector<8x32xf32>
    %148 = vector.extract_strided_slice %146 {offsets = [0, 32], sizes = [8, 32], strides = [1, 1]} : vector<8x64xf32> to vector<8x32xf32>
    %c0_63 = arith.constant 0 : index
    %c0_64 = arith.constant 0 : index
    %149 = vector.load %arg4[%c0_63, %c0_64] : memref<8x8xf32, #tpu.memory_space<vmem>>, vector<8x8xf32>
    %150 = arith.truncf %140 : vector<8x32xf32> to vector<8x32xbf16>
    %151 = arith.truncf %147 : vector<8x32xf32> to vector<8x32xbf16>
    %152 = arith.truncf %148 : vector<8x32xf32> to vector<8x32xbf16>
    %153 = vector.extract_strided_slice %150 {offsets = [0, 0], sizes = [8, 8], strides = [1, 1]} : vector<8x32xbf16> to vector<8x8xbf16>
    %154 = vector.extract_strided_slice %151 {offsets = [0, 0], sizes = [8, 8], strides = [1, 1]} : vector<8x32xbf16> to vector<8x8xbf16>
    %cst_65 = arith.constant dense<0.000000e+00> : vector<8x8xf32>
    %155 = tpu.matmul %153, %154, %cst_65 {dimension_numbers = #tpu.dot_dimension_numbers<[1], [1], [0], [0], [0, 0, 1, 0], [], []>} : vector<8x8xbf16>, vector<8x8xbf16>, vector<8x8xf32> -> vector<8x8xf32>
    %cst_66 = arith.constant 0.353553385 : f32
    %156 = vector.broadcast %cst_66 : f32 to vector<8x8xf32>
    %157 = arith.mulf %155, %156 : vector<8x8xf32>
    %cst_67 = arith.constant 0.000000e+00 : f32
    %158 = vector.broadcast %cst_67 : f32 to vector<8x8xf32>
    %159 = arith.cmpf oeq, %149, %158 : vector<8x8xf32>
    %cst_68 = arith.constant -1.000000e+09 : f32
    %160 = vector.broadcast %cst_68 : f32 to vector<8x8xf32>
    %161 = arith.select %159, %160, %157 : vector<8x8xi1>, vector<8x8xf32>
    %cst_69 = arith.constant dense<0xFF800000> : vector<8xf32>
    %162 = vector.multi_reduction <maximumf>, %161, %cst_69 [1] : vector<8x8xf32> to vector<8xf32>
    %163 = vector.shape_cast %162 : vector<8xf32> to vector<8x1xf32>
    %164 = vector.broadcast %163 : vector<8x1xf32> to vector<8x8xf32>
    %165 = arith.subf %161, %164 : vector<8x8xf32>
    %166 = math.exp %165 : vector<8x8xf32>
    %cst_70 = arith.constant dense<0.000000e+00> : vector<8xf32>
    %167 = vector.multi_reduction <add>, %166, %cst_70 [1] : vector<8x8xf32> to vector<8xf32>
    %168 = vector.shape_cast %167 : vector<8xf32> to vector<8x1xf32>
    %169 = vector.broadcast %168 : vector<8x1xf32> to vector<8x8xf32>
    %170 = arith.divf %166, %169 : vector<8x8xf32>
    %171 = arith.truncf %170 : vector<8x8xf32> to vector<8x8xbf16>
    %172 = vector.extract_strided_slice %152 {offsets = [0, 0], sizes = [8, 8], strides = [1, 1]} : vector<8x32xbf16> to vector<8x8xbf16>
    %cst_71 = arith.constant dense<0.000000e+00> : vector<8x8xf32>
    %173 = tpu.matmul %171, %172, %cst_71 {dimension_numbers = #tpu.dot_dimension_numbers<[1], [0], [0], [1], [0, 0, 1, 1], [], []>} : vector<8x8xbf16>, vector<8x8xbf16>, vector<8x8xf32> -> vector<8x8xf32>
    %174 = vector.extract_strided_slice %150 {offsets = [0, 8], sizes = [8, 8], strides = [1, 1]} : vector<8x32xbf16> to vector<8x8xbf16>
    %175 = vector.extract_strided_slice %151 {offsets = [0, 8], sizes = [8, 8], strides = [1, 1]} : vector<8x32xbf16> to vector<8x8xbf16>
    %cst_72 = arith.constant dense<0.000000e+00> : vector<8x8xf32>
    %176 = tpu.matmul %174, %175, %cst_72 {dimension_numbers = #tpu.dot_dimension_numbers<[1], [1], [0], [0], [0, 0, 1, 0], [], []>} : vector<8x8xbf16>, vector<8x8xbf16>, vector<8x8xf32> -> vector<8x8xf32>
    %cst_73 = arith.constant 0.353553385 : f32
    %177 = vector.broadcast %cst_73 : f32 to vector<8x8xf32>
    %178 = arith.mulf %176, %177 : vector<8x8xf32>
    %cst_74 = arith.constant 0.000000e+00 : f32
    %179 = vector.broadcast %cst_74 : f32 to vector<8x8xf32>
    %180 = arith.cmpf oeq, %149, %179 : vector<8x8xf32>
    %cst_75 = arith.constant -1.000000e+09 : f32
    %181 = vector.broadcast %cst_75 : f32 to vector<8x8xf32>
    %182 = arith.select %180, %181, %178 : vector<8x8xi1>, vector<8x8xf32>
    %cst_76 = arith.constant dense<0xFF800000> : vector<8xf32>
    %183 = vector.multi_reduction <maximumf>, %182, %cst_76 [1] : vector<8x8xf32> to vector<8xf32>
    %184 = vector.shape_cast %183 : vector<8xf32> to vector<8x1xf32>
    %185 = vector.broadcast %184 : vector<8x1xf32> to vector<8x8xf32>
    %186 = arith.subf %182, %185 : vector<8x8xf32>
    %187 = math.exp %186 : vector<8x8xf32>
    %cst_77 = arith.constant dense<0.000000e+00> : vector<8xf32>
    %188 = vector.multi_reduction <add>, %187, %cst_77 [1] : vector<8x8xf32> to vector<8xf32>
    %189 = vector.shape_cast %188 : vector<8xf32> to vector<8x1xf32>
    %190 = vector.broadcast %189 : vector<8x1xf32> to vector<8x8xf32>
    %191 = arith.divf %187, %190 : vector<8x8xf32>
    %192 = arith.truncf %191 : vector<8x8xf32> to vector<8x8xbf16>
    %193 = vector.extract_strided_slice %152 {offsets = [0, 8], sizes = [8, 8], strides = [1, 1]} : vector<8x32xbf16> to vector<8x8xbf16>
    %cst_78 = arith.constant dense<0.000000e+00> : vector<8x8xf32>
    %194 = tpu.matmul %192, %193, %cst_78 {dimension_numbers = #tpu.dot_dimension_numbers<[1], [0], [0], [1], [0, 0, 1, 1], [], []>} : vector<8x8xbf16>, vector<8x8xbf16>, vector<8x8xf32> -> vector<8x8xf32>
    %195 = vector.extract_strided_slice %150 {offsets = [0, 16], sizes = [8, 8], strides = [1, 1]} : vector<8x32xbf16> to vector<8x8xbf16>
    %196 = vector.extract_strided_slice %151 {offsets = [0, 16], sizes = [8, 8], strides = [1, 1]} : vector<8x32xbf16> to vector<8x8xbf16>
    %cst_79 = arith.constant dense<0.000000e+00> : vector<8x8xf32>
    %197 = tpu.matmul %195, %196, %cst_79 {dimension_numbers = #tpu.dot_dimension_numbers<[1], [1], [0], [0], [0, 0, 1, 0], [], []>} : vector<8x8xbf16>, vector<8x8xbf16>, vector<8x8xf32> -> vector<8x8xf32>
    %cst_80 = arith.constant 0.353553385 : f32
    %198 = vector.broadcast %cst_80 : f32 to vector<8x8xf32>
    %199 = arith.mulf %197, %198 : vector<8x8xf32>
    %cst_81 = arith.constant 0.000000e+00 : f32
    %200 = vector.broadcast %cst_81 : f32 to vector<8x8xf32>
    %201 = arith.cmpf oeq, %149, %200 : vector<8x8xf32>
    %cst_82 = arith.constant -1.000000e+09 : f32
    %202 = vector.broadcast %cst_82 : f32 to vector<8x8xf32>
    %203 = arith.select %201, %202, %199 : vector<8x8xi1>, vector<8x8xf32>
    %cst_83 = arith.constant dense<0xFF800000> : vector<8xf32>
    %204 = vector.multi_reduction <maximumf>, %203, %cst_83 [1] : vector<8x8xf32> to vector<8xf32>
    %205 = vector.shape_cast %204 : vector<8xf32> to vector<8x1xf32>
    %206 = vector.broadcast %205 : vector<8x1xf32> to vector<8x8xf32>
    %207 = arith.subf %203, %206 : vector<8x8xf32>
    %208 = math.exp %207 : vector<8x8xf32>
    %cst_84 = arith.constant dense<0.000000e+00> : vector<8xf32>
    %209 = vector.multi_reduction <add>, %208, %cst_84 [1] : vector<8x8xf32> to vector<8xf32>
    %210 = vector.shape_cast %209 : vector<8xf32> to vector<8x1xf32>
    %211 = vector.broadcast %210 : vector<8x1xf32> to vector<8x8xf32>
    %212 = arith.divf %208, %211 : vector<8x8xf32>
    %213 = arith.truncf %212 : vector<8x8xf32> to vector<8x8xbf16>
    %214 = vector.extract_strided_slice %152 {offsets = [0, 16], sizes = [8, 8], strides = [1, 1]} : vector<8x32xbf16> to vector<8x8xbf16>
    %cst_85 = arith.constant dense<0.000000e+00> : vector<8x8xf32>
    %215 = tpu.matmul %213, %214, %cst_85 {dimension_numbers = #tpu.dot_dimension_numbers<[1], [0], [0], [1], [0, 0, 1, 1], [], []>} : vector<8x8xbf16>, vector<8x8xbf16>, vector<8x8xf32> -> vector<8x8xf32>
    %216 = vector.extract_strided_slice %150 {offsets = [0, 24], sizes = [8, 8], strides = [1, 1]} : vector<8x32xbf16> to vector<8x8xbf16>
    %217 = vector.extract_strided_slice %151 {offsets = [0, 24], sizes = [8, 8], strides = [1, 1]} : vector<8x32xbf16> to vector<8x8xbf16>
    %cst_86 = arith.constant dense<0.000000e+00> : vector<8x8xf32>
    %218 = tpu.matmul %216, %217, %cst_86 {dimension_numbers = #tpu.dot_dimension_numbers<[1], [1], [0], [0], [0, 0, 1, 0], [], []>} : vector<8x8xbf16>, vector<8x8xbf16>, vector<8x8xf32> -> vector<8x8xf32>
    %cst_87 = arith.constant 0.353553385 : f32
    %219 = vector.broadcast %cst_87 : f32 to vector<8x8xf32>
    %220 = arith.mulf %218, %219 : vector<8x8xf32>
    %cst_88 = arith.constant 0.000000e+00 : f32
    %221 = vector.broadcast %cst_88 : f32 to vector<8x8xf32>
    %222 = arith.cmpf oeq, %149, %221 : vector<8x8xf32>
    %cst_89 = arith.constant -1.000000e+09 : f32
    %223 = vector.broadcast %cst_89 : f32 to vector<8x8xf32>
    %224 = arith.select %222, %223, %220 : vector<8x8xi1>, vector<8x8xf32>
    %cst_90 = arith.constant dense<0xFF800000> : vector<8xf32>
    %225 = vector.multi_reduction <maximumf>, %224, %cst_90 [1] : vector<8x8xf32> to vector<8xf32>
    %226 = vector.shape_cast %225 : vector<8xf32> to vector<8x1xf32>
    %227 = vector.broadcast %226 : vector<8x1xf32> to vector<8x8xf32>
    %228 = arith.subf %224, %227 : vector<8x8xf32>
    %229 = math.exp %228 : vector<8x8xf32>
    %cst_91 = arith.constant dense<0.000000e+00> : vector<8xf32>
    %230 = vector.multi_reduction <add>, %229, %cst_91 [1] : vector<8x8xf32> to vector<8xf32>
    %231 = vector.shape_cast %230 : vector<8xf32> to vector<8x1xf32>
    %232 = vector.broadcast %231 : vector<8x1xf32> to vector<8x8xf32>
    %233 = arith.divf %229, %232 : vector<8x8xf32>
    %234 = arith.truncf %233 : vector<8x8xf32> to vector<8x8xbf16>
    %235 = vector.extract_strided_slice %152 {offsets = [0, 24], sizes = [8, 8], strides = [1, 1]} : vector<8x32xbf16> to vector<8x8xbf16>
    %cst_92 = arith.constant dense<0.000000e+00> : vector<8x8xf32>
    %236 = tpu.matmul %234, %235, %cst_92 {dimension_numbers = #tpu.dot_dimension_numbers<[1], [0], [0], [1], [0, 0, 1, 1], [], []>} : vector<8x8xbf16>, vector<8x8xbf16>, vector<8x8xf32> -> vector<8x8xf32>
    %237 = tpu.concatenate %173, %194, %215, %236 in 1 : vector<8x8xf32>, vector<8x8xf32>, vector<8x8xf32>, vector<8x8xf32> -> vector<8x32xf32>
    %238 = arith.truncf %237 : vector<8x32xf32> to vector<8x32xbf16>
    %c0_93 = arith.constant 0 : index
    %c0_94 = arith.constant 0 : index
    %239 = vector.load %arg13[%c0_93, %c0_94] : memref<32x32xbf16, #tpu.memory_space<vmem>>, vector<32x32xbf16>
    %cst_95 = arith.constant dense<0.000000e+00> : vector<8x32xf32>
    %240 = tpu.matmul %238, %239, %cst_95 {dimension_numbers = #tpu.dot_dimension_numbers<[1], [0], [0], [1], [0, 0, 1, 1], [], []>} : vector<8x32xbf16>, vector<32x32xbf16>, vector<8x32xf32> -> vector<8x32xf32>
    %c0_96 = arith.constant 0 : index
    %c0_97 = arith.constant 0 : index
    %241 = vector.load %arg14[%c0_96, %c0_97] : memref<1x32xf32, #tpu.memory_space<vmem>>, vector<1x32xf32>
    %242 = vector.broadcast %241 : vector<1x32xf32> to vector<8x32xf32>
    %243 = arith.addf %240, %242 : vector<8x32xf32>
    %244 = arith.addf %134, %243 : vector<8x32xf32>
    %245 = vector.extract_strided_slice %4 {offsets = [1, 0], sizes = [1, 32], strides = [1, 1]} : vector<3x32xf32> to vector<1x32xf32>
    %246 = vector.extract_strided_slice %5 {offsets = [1, 0], sizes = [1, 32], strides = [1, 1]} : vector<3x32xf32> to vector<1x32xf32>
    %cst_98 = arith.constant dense<0.000000e+00> : vector<8xf32>
    %247 = vector.multi_reduction <add>, %244, %cst_98 [1] : vector<8x32xf32> to vector<8xf32>
    %248 = vector.shape_cast %247 : vector<8xf32> to vector<8x1xf32>
    %cst_99 = arith.constant 3.200000e+01 : f32
    %249 = vector.broadcast %cst_99 : f32 to vector<8x1xf32>
    %250 = arith.divf %248, %249 : vector<8x1xf32>
    %251 = vector.broadcast %250 : vector<8x1xf32> to vector<8x32xf32>
    %252 = arith.subf %244, %251 : vector<8x32xf32>
    %253 = arith.mulf %252, %252 : vector<8x32xf32>
    %cst_100 = arith.constant dense<0.000000e+00> : vector<8xf32>
    %254 = vector.multi_reduction <add>, %253, %cst_100 [1] : vector<8x32xf32> to vector<8xf32>
    %255 = vector.shape_cast %254 : vector<8xf32> to vector<8x1xf32>
    %cst_101 = arith.constant 3.200000e+01 : f32
    %256 = vector.broadcast %cst_101 : f32 to vector<8x1xf32>
    %257 = arith.divf %255, %256 : vector<8x1xf32>
    %258 = vector.broadcast %250 : vector<8x1xf32> to vector<8x32xf32>
    %259 = arith.subf %244, %258 : vector<8x32xf32>
    %cst_102 = arith.constant 9.99999974E-6 : f32
    %260 = vector.broadcast %cst_102 : f32 to vector<8x1xf32>
    %261 = arith.addf %257, %260 : vector<8x1xf32>
    %262 = math.rsqrt %261 : vector<8x1xf32>
    %263 = vector.broadcast %262 : vector<8x1xf32> to vector<8x32xf32>
    %264 = arith.mulf %259, %263 : vector<8x32xf32>
    %265 = vector.broadcast %245 : vector<1x32xf32> to vector<8x32xf32>
    %266 = arith.mulf %264, %265 : vector<8x32xf32>
    %267 = vector.broadcast %246 : vector<1x32xf32> to vector<8x32xf32>
    %268 = arith.addf %266, %267 : vector<8x32xf32>
    %269 = arith.truncf %268 : vector<8x32xf32> to vector<8x32xbf16>
    %c0_103 = arith.constant 0 : index
    %c0_104 = arith.constant 0 : index
    %270 = vector.load %arg15[%c0_103, %c0_104] : memref<32x64xbf16, #tpu.memory_space<vmem>>, vector<32x64xbf16>
    %cst_105 = arith.constant dense<0.000000e+00> : vector<8x64xf32>
    %271 = tpu.matmul %269, %270, %cst_105 {dimension_numbers = #tpu.dot_dimension_numbers<[1], [0], [0], [1], [0, 0, 1, 1], [], []>} : vector<8x32xbf16>, vector<32x64xbf16>, vector<8x64xf32> -> vector<8x64xf32>
    %c0_106 = arith.constant 0 : index
    %c0_107 = arith.constant 0 : index
    %272 = vector.load %arg16[%c0_106, %c0_107] : memref<1x64xf32, #tpu.memory_space<vmem>>, vector<1x64xf32>
    %273 = vector.broadcast %272 : vector<1x64xf32> to vector<8x64xf32>
    %274 = arith.addf %271, %273 : vector<8x64xf32>
    %cst_108 = arith.constant 0.000000e+00 : f32
    %275 = vector.broadcast %cst_108 : f32 to vector<8x64xf32>
    %276 = arith.maximumf %274, %275 : vector<8x64xf32>
    %277 = arith.truncf %276 : vector<8x64xf32> to vector<8x64xbf16>
    %c0_109 = arith.constant 0 : index
    %c0_110 = arith.constant 0 : index
    %278 = vector.load %arg17[%c0_109, %c0_110] : memref<64x32xbf16, #tpu.memory_space<vmem>>, vector<64x32xbf16>
    %cst_111 = arith.constant dense<0.000000e+00> : vector<8x32xf32>
    %279 = tpu.matmul %277, %278, %cst_111 {dimension_numbers = #tpu.dot_dimension_numbers<[1], [0], [0], [1], [0, 0, 1, 1], [], []>} : vector<8x64xbf16>, vector<64x32xbf16>, vector<8x32xf32> -> vector<8x32xf32>
    %c0_112 = arith.constant 0 : index
    %c0_113 = arith.constant 0 : index
    %280 = vector.load %arg18[%c0_112, %c0_113] : memref<1x32xf32, #tpu.memory_space<vmem>>, vector<1x32xf32>
    %281 = vector.broadcast %280 : vector<1x32xf32> to vector<8x32xf32>
    %282 = arith.addf %279, %281 : vector<8x32xf32>
    %283 = arith.addf %268, %282 : vector<8x32xf32>
    %284 = vector.extract_strided_slice %4 {offsets = [2, 0], sizes = [1, 32], strides = [1, 1]} : vector<3x32xf32> to vector<1x32xf32>
    %285 = vector.extract_strided_slice %5 {offsets = [2, 0], sizes = [1, 32], strides = [1, 1]} : vector<3x32xf32> to vector<1x32xf32>
    %cst_114 = arith.constant dense<0.000000e+00> : vector<8xf32>
    %286 = vector.multi_reduction <add>, %283, %cst_114 [1] : vector<8x32xf32> to vector<8xf32>
    %287 = vector.shape_cast %286 : vector<8xf32> to vector<8x1xf32>
    %cst_115 = arith.constant 3.200000e+01 : f32
    %288 = vector.broadcast %cst_115 : f32 to vector<8x1xf32>
    %289 = arith.divf %287, %288 : vector<8x1xf32>
    %290 = vector.broadcast %289 : vector<8x1xf32> to vector<8x32xf32>
    %291 = arith.subf %283, %290 : vector<8x32xf32>
    %292 = arith.mulf %291, %291 : vector<8x32xf32>
    %cst_116 = arith.constant dense<0.000000e+00> : vector<8xf32>
    %293 = vector.multi_reduction <add>, %292, %cst_116 [1] : vector<8x32xf32> to vector<8xf32>
    %294 = vector.shape_cast %293 : vector<8xf32> to vector<8x1xf32>
    %cst_117 = arith.constant 3.200000e+01 : f32
    %295 = vector.broadcast %cst_117 : f32 to vector<8x1xf32>
    %296 = arith.divf %294, %295 : vector<8x1xf32>
    %297 = vector.broadcast %289 : vector<8x1xf32> to vector<8x32xf32>
    %298 = arith.subf %283, %297 : vector<8x32xf32>
    %cst_118 = arith.constant 9.99999974E-6 : f32
    %299 = vector.broadcast %cst_118 : f32 to vector<8x1xf32>
    %300 = arith.addf %296, %299 : vector<8x1xf32>
    %301 = math.rsqrt %300 : vector<8x1xf32>
    %302 = vector.broadcast %301 : vector<8x1xf32> to vector<8x32xf32>
    %303 = arith.mulf %298, %302 : vector<8x32xf32>
    %304 = vector.broadcast %284 : vector<1x32xf32> to vector<8x32xf32>
    %305 = arith.mulf %303, %304 : vector<8x32xf32>
    %306 = vector.broadcast %285 : vector<1x32xf32> to vector<8x32xf32>
    %307 = arith.addf %305, %306 : vector<8x32xf32>
    %308 = vector.shape_cast %307 : vector<8x32xf32> to vector<1x8x32xf32>
    %c0_119 = arith.constant 0 : index
    %c0_120 = arith.constant 0 : index
    %c0_121 = arith.constant 0 : index
    %309 = vector.load %arg21[%c0_119, %c0_120, %c0_121] : memref<1x8x32xf32, #tpu.memory_space<vmem>>, vector<1x8x32xf32>
    tpu.vector_store %arg21[%c0_119, %c0_120, %c0_121], %308 {strides = array<i32>} : memref<1x8x32xf32, #tpu.memory_space<vmem>>, vector<1x8x32xf32>,
    return
  }
  func.func @transform_0(%arg0: i32) -> (i32, i32, i32) {
    %c0_i32 = arith.constant 0 : i32
    %c0_i32_0 = arith.constant 0 : i32
    %c0_i32_1 = arith.constant 0 : i32
    return %arg0, %c0_i32, %c0_i32_0 : i32, i32, i32
  }
  func.func @transform_1(%arg0: i32) -> (i32, i32, i32) {
    %c0_i32 = arith.constant 0 : i32
    %c0_i32_0 = arith.constant 0 : i32
    %c0_i32_1 = arith.constant 0 : i32
    return %arg0, %c0_i32, %c0_i32_0 : i32, i32, i32
  }
  func.func @transform_2(%arg0: i32) -> (i32, i32) {
    %c0_i32 = arith.constant 0 : i32
    %c0_i32_0 = arith.constant 0 : i32
    %c0_i32_1 = arith.constant 0 : i32
    return %c0_i32, %c0_i32_0 : i32, i32
  }
  func.func @transform_3(%arg0: i32) -> (i32, i32) {
    %c0_i32 = arith.constant 0 : i32
    %c0_i32_0 = arith.constant 0 : i32
    %c0_i32_1 = arith.constant 0 : i32
    return %c0_i32, %c0_i32_0 : i32, i32
  }
  func.func @transform_4(%arg0: i32) -> (i32, i32) {
    %c0_i32 = arith.constant 0 : i32
    %c0_i32_0 = arith.constant 0 : i32
    %c0_i32_1 = arith.constant 0 : i32
    return %c0_i32, %c0_i32_0 : i32, i32
  }
  func.func @transform_5(%arg0: i32) -> (i32, i32) {
    %c0_i32 = arith.constant 0 : i32
    %c0_i32_0 = arith.constant 0 : i32
    %c0_i32_1 = arith.constant 0 : i32
    return %c0_i32, %c0_i32_0 : i32, i32
  }
  func.func @transform_6(%arg0: i32) -> (i32, i32) {
    %c0_i32 = arith.constant 0 : i32
    %c0_i32_0 = arith.constant 0 : i32
    %c0_i32_1 = arith.constant 0 : i32
    return %c0_i32, %c0_i32_0 : i32, i32
  }
  func.func @transform_7(%arg0: i32) -> (i32, i32) {
    %c0_i32 = arith.constant 0 : i32
    %c0_i32_0 = arith.constant 0 : i32
    %c0_i32_1 = arith.constant 0 : i32
    return %c0_i32, %c0_i32_0 : i32, i32
  }
  func.func @transform_8(%arg0: i32) -> (i32, i32) {
    %c0_i32 = arith.constant 0 : i32
    %c0_i32_0 = arith.constant 0 : i32
    %c0_i32_1 = arith.constant 0 : i32
    return %c0_i32, %c0_i32_0 : i32, i32
  }
  func.func @transform_9(%arg0: i32) -> (i32, i32) {
    %c0_i32 = arith.constant 0 : i32
    %c0_i32_0 = arith.constant 0 : i32
    %c0_i32_1 = arith.constant 0 : i32
    return %c0_i32, %c0_i32_0 : i32, i32
  }
  func.func @transform_10(%arg0: i32) -> (i32, i32) {
    %c0_i32 = arith.constant 0 : i32
    %c0_i32_0 = arith.constant 0 : i32
    %c0_i32_1 = arith.constant 0 : i32
    return %c0_i32, %c0_i32_0 : i32, i32
  }
  func.func @transform_11(%arg0: i32) -> (i32, i32) {
    %c0_i32 = arith.constant 0 : i32
    %c0_i32_0 = arith.constant 0 : i32
    %c0_i32_1 = arith.constant 0 : i32
    return %c0_i32, %c0_i32_0 : i32, i32
  }
  func.func @transform_12(%arg0: i32) -> (i32, i32) {
    %c0_i32 = arith.constant 0 : i32
    %c0_i32_0 = arith.constant 0 : i32
    %c0_i32_1 = arith.constant 0 : i32
    return %c0_i32, %c0_i32_0 : i32, i32
  }
  func.func @transform_13(%arg0: i32) -> (i32, i32) {
    %c0_i32 = arith.constant 0 : i32
    %c0_i32_0 = arith.constant 0 : i32
    %c0_i32_1 = arith.constant 0 : i32
    return %c0_i32, %c0_i32_0 : i32, i32
  }
  func.func @transform_14(%arg0: i32) -> (i32, i32) {
    %c0_i32 = arith.constant 0 : i32
    %c0_i32_0 = arith.constant 0 : i32
    %c0_i32_1 = arith.constant 0 : i32
    return %c0_i32, %c0_i32_0 : i32, i32
  }
  func.func @transform_15(%arg0: i32) -> (i32, i32) {
    %c0_i32 = arith.constant 0 : i32
    %c0_i32_0 = arith.constant 0 : i32
    %c0_i32_1 = arith.constant 0 : i32
    return %c0_i32, %c0_i32_0 : i32, i32
  }
  func.func @transform_16(%arg0: i32) -> (i32, i32) {
    %c0_i32 = arith.constant 0 : i32
    %c0_i32_0 = arith.constant 0 : i32
    %c0_i32_1 = arith.constant 0 : i32
    return %c0_i32, %c0_i32_0 : i32, i32
  }
  func.func @transform_17(%arg0: i32) -> (i32, i32) {
    %c0_i32 = arith.constant 0 : i32
    %c0_i32_0 = arith.constant 0 : i32
    %c0_i32_1 = arith.constant 0 : i32
    return %c0_i32, %c0_i32_0 : i32, i32
  }
  func.func @transform_18(%arg0: i32) -> (i32, i32) {
    %c0_i32 = arith.constant 0 : i32
    %c0_i32_0 = arith.constant 0 : i32
    %c0_i32_1 = arith.constant 0 : i32
    return %c0_i32, %c0_i32_0 : i32, i32
  }
  func.func @transform_19(%arg0: i32) -> (i32, i32) {
    %c0_i32 = arith.constant 0 : i32
    %c0_i32_0 = arith.constant 0 : i32
    %c0_i32_1 = arith.constant 0 : i32
    return %c0_i32, %c0_i32_0 : i32, i32
  }
  func.func @transform_20(%arg0: i32) -> (i32, i32, i32) {
    %c0_i32 = arith.constant 0 : i32
    %c0_i32_0 = arith.constant 0 : i32
    %c0_i32_1 = arith.constant 0 : i32
    return %arg0, %c0_i32, %c0_i32_0 : i32, i32, i32
  }
}

</mosaic_0001>

<llo_original>
// kernel: tpu_custom_call.1
$region0: #{tpu_custom_call.1}
  #allocation0 [shape = 'u32[]', space=smem, size = 0x4, offset = 0x4, fixed_abs, tag = 'smem constant byte address 0x4 - core index']
  #allocation1 [shape = 'u32[72,128]{1,0:T(1,128)}', space=vmem, size = 0x9000, scoped, tag = 'internal scratch']
  %s0 = inlined_call_operand.vmem [shape: f32[2,8,32], index: 0, kind: input, shape index: {}]
  %s1 = inlined_call_operand.vmem [shape: f32[2,8,32], index: 1, kind: input, shape index: {}]
  %s2 = inlined_call_operand.hbm [shape: f32[8,8], index: 2, kind: input, shape index: {}]
  %s3 = inlined_call_operand.hbm [shape: f32[8,8], index: 3, kind: input, shape index: {}]
  %s4 = inlined_call_operand.vmem [shape: bf16[32,96], index: 4, kind: input, shape index: {}]
  %s5 = inlined_call_operand.hbm [shape: f32[1,96], index: 5, kind: input, shape index: {}]
  %s6 = inlined_call_operand.hbm [shape: bf16[32,32], index: 6, kind: input, shape index: {}]
  %s7 = inlined_call_operand.hbm [shape: f32[1,32], index: 7, kind: input, shape index: {}]
  %s8 = inlined_call_operand.hbm [shape: bf16[32,32], index: 8, kind: input, shape index: {}]
  %s9 = inlined_call_operand.hbm [shape: f32[1,32], index: 9, kind: input, shape index: {}]
  %s10 = inlined_call_operand.hbm [shape: bf16[32,64], index: 10, kind: input, shape index: {}]
  %s11 = inlined_call_operand.vmem [shape: f32[1,64], index: 11, kind: input, shape index: {}]
  %s12 = inlined_call_operand.hbm [shape: bf16[32,32], index: 12, kind: input, shape index: {}]
  %s13 = inlined_call_operand.vmem [shape: f32[1,32], index: 13, kind: input, shape index: {}]
  %s14 = inlined_call_operand.hbm [shape: bf16[32,64], index: 14, kind: input, shape index: {}]
  %s15 = inlined_call_operand.vmem [shape: f32[1,64], index: 15, kind: input, shape index: {}]
  %s16 = inlined_call_operand.vmem [shape: bf16[64,32], index: 16, kind: input, shape index: {}]
  %s17 = inlined_call_operand.vmem [shape: f32[1,32], index: 17, kind: input, shape index: {}]
  %s18 = inlined_call_operand.vmem [shape: f32[3,32], index: 18, kind: input, shape index: {}]
  %s19 = inlined_call_operand.vmem [shape: f32[3,32], index: 19, kind: input, shape index: {}]
  %s20 = inlined_call_operand.hbm [shape: f32[2,8,32], index: 20, kind: output, shape index: {}]
  %s21 = sld [smem:[#allocation0]]
  $region153: #{tpu_custom_call.1} parent=0
    _
  %s23 = ssub.s32 1, %s21
  %s24 = scalar_select 0, %s23, %s21
  $region1: #{tpu_custom_call.1} parent=0
    #allocation2 [shape = 'u8[4096]{0}', space=vmem, size = 0x1000, scoped, tag = 'input window, operand 2, single buffered']
    #allocation3 [shape = 's32[2]{0}', space=sflag, size = 0x8, scoped, tag = 'scoped memory for tpu_custom_call.1']
    #allocation4 [shape = 's32[2]{0}', space=sflag, size = 0x8, scoped, tag = 'scoped memory for tpu_custom_call.1']
    #allocation5 [shape = 'u8[4096]{0}', space=vmem, size = 0x1000, scoped, tag = 'input window, operand 3, single buffered']
    #allocation6 [shape = 's32[1]{0}', space=sflag, size = 0x4, scoped, tag = 'scoped memory for tpu_custom_call.1']
    #allocation7 [shape = 'u8[512]{0}', space=vmem, size = 0x400, scoped, tag = 'input window, operand 5, single buffered']
    #allocation8 [shape = 'u8[8192]{0}', space=vmem, size = 0x2000, scoped, tag = 'input window, operand 6, single buffered']
    #allocation9 [shape = 's32[1]{0}', space=sflag, size = 0x4, scoped, tag = 'scoped memory for tpu_custom_call.1']
    #allocation10 [shape = 'u8[512]{0}', space=vmem, size = 0x400, scoped, tag = 'input window, operand 7, single buffered']
    #allocation11 [shape = 'u8[8192]{0}', space=vmem, size = 0x2000, scoped, tag = 'input window, operand 8, single buffered']
    #allocation12 [shape = 's32[1]{0}', space=sflag, size = 0x4, scoped, tag = 'scoped memory for tpu_custom_call.1']
    #allocation13 [shape = 'u8[512]{0}', space=vmem, size = 0x400, scoped, tag = 'input window, operand 9, single buffered']
    #allocation14 [shape = 'u8[8192]{0}', space=vmem, size = 0x2000, scoped, tag = 'input window, operand 10, single buffered']
    #allocation15 [shape = 's32[1]{0}', space=sflag, size = 0x4, scoped, tag = 'scoped memory for tpu_custom_call.1']
    #allocation16 [shape = 'u8[8192]{0}', space=vmem, size = 0x2000, scoped, tag = 'input window, operand 12, single buffered']
    #allocation17 [shape = 'u8[8192]{0}', space=vmem, size = 0x2000, scoped, tag = 'input window, operand 14, single buffered']
    #allocation18 [shape = 's32[1]{0}', space=sflag, size = 0x4, scoped, tag = 'scoped memory for tpu_custom_call.1']
    #allocation19 [shape = 'u8[8192]{0}', space=vmem, size = 0x2000, scoped, tag = 'output window, operand 0']
    %25 = vsyncpa [#allocation3], 0
    %26 = vsyncpa [#allocation6], 0
    %27 = vsyncpa [#allocation9], 0
    %28 = vsyncpa [#allocation12], 0
    %29 = vsyncpa [#allocation15], 0
    %30 = vsyncpa [#allocation18], 0
    %31 = vsyncpa [#allocation4], 0
    %s32 = scalar_lea.sflag [#allocation4], 1
    %33 = vsyncpa %s32, 0
    loop: start=0, step=1, limit=4
    $region2: #{tpu_custom_call.1} parent=1 // loop_pre_header
      _
    $region3: #{tpu_custom_call.1} parent=1 // loop_header
      %s35 = sphi 0, %s39
      %p36 = scmp.ge.s32.totalorder %s35, 4
      %s45 = sphi 0, %s47
      %s48 = sphi 0, %s45
      %s49 = sphi 0, %s48
      %s65 = sphi 0, %s49
      %s71 = sphi 0, %s73
      %s74 = sphi 0, %s71
      %s75 = sphi 0, %s74
      %s91 = sphi 0, %s75
      %s95 = sphi 0, %s95
      %s97 = sphi 0, %s95
      %s98 = sphi 0, %s97
      %s112 = sphi 0, %s98
      %s116 = sphi 0, %s116
      %s118 = sphi 0, %s116
      %s119 = sphi 0, %s118
      %s133 = sphi 0, %s119
      %s137 = sphi 0, %s137
      %s139 = sphi 0, %s137
      %s140 = sphi 0, %s139
      %s154 = sphi 0, %s140
      %s158 = sphi 0, %s158
      %s160 = sphi 0, %s158
      %s161 = sphi 0, %s160
      %s175 = sphi 0, %s161
      %s179 = sphi 0, %s179
      %s181 = sphi 0, %s179
      %s182 = sphi 0, %s181
      %s196 = sphi 0, %s182
      %s200 = sphi 0, %s200
      %s202 = sphi 0, %s200
      %s203 = sphi 0, %s202
      %s217 = sphi 0, %s203
      %s221 = sphi 0, %s221
      %s223 = sphi 0, %s221
      %s224 = sphi 0, %s223
      %s238 = sphi 0, %s224
      %s242 = sphi 0, %s242
      %s244 = sphi 0, %s242
      %s245 = sphi 0, %s244
      %s259 = sphi 0, %s245
      %s263 = sphi 0, %s263
      %s265 = sphi 0, %s263
      %s266 = sphi 0, %s265
      %s280 = sphi 0, %s266
      %s284 = sphi 0, %s284
      %s286 = sphi 0, %s284
      %s287 = sphi 0, %s286
      %s301 = sphi 0, %s287
      %s305 = sphi 0, %s305
      %s307 = sphi 0, %s305
      %s308 = sphi 0, %s307
      %s322 = sphi 0, %s308
      %s326 = sphi 0, %s326
      %s328 = sphi 0, %s326
      %s329 = sphi 0, %s328
      %s343 = sphi 0, %s329
      %s347 = sphi 0, %s347
      %s349 = sphi 0, %s347
      %s350 = sphi 0, %s349
      %s364 = sphi 0, %s350
      %s368 = sphi 0, %s368
      %s370 = sphi 0, %s368
      %s371 = sphi 0, %s370
      %s385 = sphi 0, %s371
      %s389 = sphi 0, %s389
      %s391 = sphi 0, %s389
      %s392 = sphi 0, %s391
      %s406 = sphi 0, %s392
      %s410 = sphi 0, %s410
      %s412 = sphi 0, %s410
      %s413 = sphi 0, %s412
      %s427 = sphi 0, %s413
      %s431 = sphi 0, %s431
      %s433 = sphi 0, %s431
      %s434 = sphi 0, %s433
      %s448 = sphi 0, %s434
      %s452 = sphi 0, %s452
      %s454 = sphi 0, %s452
      %s455 = sphi 0, %s454
      %s469 = sphi 0, %s455
      %s475 = sphi 0, %s477
      %s478 = sphi 0, %s475
      %s479 = sphi 0, %s478
      %s495 = sphi 0, %s479
    $region4: #{tpu_custom_call.1} parent=1 // loop_header_branch
      %38 = sbr.rel (%p36) target = $region8
    $region5: #{tpu_custom_call.1} parent=1 // loop_body
      %s40 = ssub.s32 %s35, 1
      %s41 = ssub.s32 %s35, 2
      %s42 = sadd.s32 %s35, 1
      %s43 = ssub.s32 %s35, %s42
      %p44 = scmp.eq.s32.totalorder %s43, 0
      %s46 = sadd.s32 %s45, 1
      %s47 = scalar_select %p44, %s45, %s46
      %p50 = pneg %p44
      %p51 = scmp.eq.s32.totalorder %s35, 1
      %p52 = por %p50, %p51
      %p53 = scmp.ne.s32.totalorder %s45, %s48
      %p54 = scmp.eq.s32.totalorder %s35, 0
      %p55 = por %p53, %p54
      %p56 = scmp.ne.s32.totalorder %s45, %s48
      %p57 = scmp.eq.s32.totalorder %s40, 1
      %p58 = por %p56, %p57
      %p59 = scmp.ne.s32.totalorder %s48, %s49
      %p60 = scmp.eq.s32.totalorder %s40, 0
      %p61 = por %p59, %p60
      %p62 = scmp.ne.s32.totalorder %s48, %s49
      %p63 = scmp.eq.s32.totalorder %s41, 1
      %p64 = por %p62, %p63
      %p66 = scmp.ne.s32.totalorder %s49, %s65
      %p67 = scmp.eq.s32.totalorder %s41, 0
      %p68 = por %p66, %p67
      %s69 = ssub.s32 %s35, %s42
      %p70 = scmp.eq.s32.totalorder %s69, 0
      %s72 = sadd.s32 %s71, 1
      %s73 = scalar_select %p70, %s71, %s72
      %p76 = pneg %p70
      %p77 = scmp.eq.s32.totalorder %s35, 1
      %p78 = por %p76, %p77
      %p79 = scmp.ne.s32.totalorder %s71, %s74
      %p80 = scmp.eq.s32.totalorder %s35, 0
      %p81 = por %p79, %p80
      %p82 = scmp.ne.s32.totalorder %s71, %s74
      %p83 = scmp.eq.s32.totalorder %s40, 1
      %p84 = por %p82, %p83
      %p85 = scmp.ne.s32.totalorder %s74, %s75
      %p86 = scmp.eq.s32.totalorder %s40, 0
      %p87 = por %p85, %p86
      %p88 = scmp.ne.s32.totalorder %s74, %s75
      %p89 = scmp.eq.s32.totalorder %s41, 1
      %p90 = por %p88, %p89
      %p92 = scmp.ne.s32.totalorder %s75, %s91
      %p93 = scmp.eq.s32.totalorder %s41, 0
      %p94 = por %p92, %p93
      %s96 = sadd.s32 %s95, 1
      %p99 = scmp.eq.s32.totalorder %s35, 1
      %p100 = scmp.ne.s32.totalorder %s95, %s97
      %p101 = scmp.eq.s32.totalorder %s35, 0
      %p102 = por %p100, %p101
      %p103 = scmp.ne.s32.totalorder %s95, %s97
      %p104 = scmp.eq.s32.totalorder %s40, 1
      %p105 = por %p103, %p104
      %p106 = scmp.ne.s32.totalorder %s97, %s98
      %p107 = scmp.eq.s32.totalorder %s40, 0
      %p108 = por %p106, %p107
      %p109 = scmp.ne.s32.totalorder %s97, %s98
      %p110 = scmp.eq.s32.totalorder %s41, 1
      %p111 = por %p109, %p110
      %p113 = scmp.ne.s32.totalorder %s98, %s112
      %p114 = scmp.eq.s32.totalorder %s41, 0
      %p115 = por %p113, %p114
      %s117 = sadd.s32 %s116, 1
      %p120 = scmp.eq.s32.totalorder %s35, 1
      %p121 = scmp.ne.s32.totalorder %s116, %s118
      %p122 = scmp.eq.s32.totalorder %s35, 0
      %p123 = por %p121, %p122
      %p124 = scmp.ne.s32.totalorder %s116, %s118
      %p125 = scmp.eq.s32.totalorder %s40, 1
      %p126 = por %p124, %p125
      %p127 = scmp.ne.s32.totalorder %s118, %s119
      %p128 = scmp.eq.s32.totalorder %s40, 0
      %p129 = por %p127, %p128
      %p130 = scmp.ne.s32.totalorder %s118, %s119
      %p131 = scmp.eq.s32.totalorder %s41, 1
      %p132 = por %p130, %p131
      %p134 = scmp.ne.s32.totalorder %s119, %s133
      %p135 = scmp.eq.s32.totalorder %s41, 0
      %p136 = por %p134, %p135
      %s138 = sadd.s32 %s137, 1
      %p141 = scmp.eq.s32.totalorder %s35, 1
      %p142 = scmp.ne.s32.totalorder %s137, %s139
      %p143 = scmp.eq.s32.totalorder %s35, 0
      %p144 = por %p142, %p143
      %p145 = scmp.ne.s32.totalorder %s137, %s139
      %p146 = scmp.eq.s32.totalorder %s40, 1
      %p147 = por %p145, %p146
      %p148 = scmp.ne.s32.totalorder %s139, %s140
      %p149 = scmp.eq.s32.totalorder %s40, 0
      %p150 = por %p148, %p149
      %p151 = scmp.ne.s32.totalorder %s139, %s140
      %p152 = scmp.eq.s32.totalorder %s41, 1
      %p153 = por %p151, %p152
      %p155 = scmp.ne.s32.totalorder %s140, %s154
      %p156 = scmp.eq.s32.totalorder %s41, 0
      %p157 = por %p155, %p156
      %s159 = sadd.s32 %s158, 1
      %p162 = scmp.eq.s32.totalorder %s35, 1
      %p163 = scmp.ne.s32.totalorder %s158, %s160
      %p164 = scmp.eq.s32.totalorder %s35, 0
      %p165 = por %p163, %p164
      %p166 = scmp.ne.s32.totalorder %s158, %s160
      %p167 = scmp.eq.s32.totalorder %s40, 1
      %p168 = por %p166, %p167
      %p169 = scmp.ne.s32.totalorder %s160, %s161
      %p170 = scmp.eq.s32.totalorder %s40, 0
      %p171 = por %p169, %p170
      %p172 = scmp.ne.s32.totalorder %s160, %s161
      %p173 = scmp.eq.s32.totalorder %s41, 1
      %p174 = por %p172, %p173
      %p176 = scmp.ne.s32.totalorder %s161, %s175
      %p177 = scmp.eq.s32.totalorder %s41, 0
      %p178 = por %p176, %p177
      %s180 = sadd.s32 %s179, 1
      %p183 = scmp.eq.s32.totalorder %s35, 1
      %p184 = scmp.ne.s32.totalorder %s179, %s181
      %p185 = scmp.eq.s32.totalorder %s35, 0
      %p186 = por %p184, %p185
      %p187 = scmp.ne.s32.totalorder %s179, %s181
      %p188 = scmp.eq.s32.totalorder %s40, 1
      %p189 = por %p187, %p188
      %p190 = scmp.ne.s32.totalorder %s181, %s182
      %p191 = scmp.eq.s32.totalorder %s40, 0
      %p192 = por %p190, %p191
      %p193 = scmp.ne.s32.totalorder %s181, %s182
      %p194 = scmp.eq.s32.totalorder %s41, 1
      %p195 = por %p193, %p194
      %p197 = scmp.ne.s32.totalorder %s182, %s196
      %p198 = scmp.eq.s32.totalorder %s41, 0
      %p199 = por %p197, %p198
      %s201 = sadd.s32 %s200, 1
      %p204 = scmp.eq.s32.totalorder %s35, 1
      %p205 = scmp.ne.s32.totalorder %s200, %s202
      %p206 = scmp.eq.s32.totalorder %s35, 0
      %p207 = por %p205, %p206
      %p208 = scmp.ne.s32.totalorder %s200, %s202
      %p209 = scmp.eq.s32.totalorder %s40, 1
      %p210 = por %p208, %p209
      %p211 = scmp.ne.s32.totalorder %s202, %s203
      %p212 = scmp.eq.s32.totalorder %s40, 0
      %p213 = por %p211, %p212
      %p214 = scmp.ne.s32.totalorder %s202, %s203
      %p215 = scmp.eq.s32.totalorder %s41, 1
      %p216 = por %p214, %p215
      %p218 = scmp.ne.s32.totalorder %s203, %s217
      %p219 = scmp.eq.s32.totalorder %s41, 0
      %p220 = por %p218, %p219
      %s222 = sadd.s32 %s221, 1
      %p225 = scmp.eq.s32.totalorder %s35, 1
      %p226 = scmp.ne.s32.totalorder %s221, %s223
      %p227 = scmp.eq.s32.totalorder %s35, 0
      %p228 = por %p226, %p227
      %p229 = scmp.ne.s32.totalorder %s221, %s223
      %p230 = scmp.eq.s32.totalorder %s40, 1
      %p231 = por %p229, %p230
      %p232 = scmp.ne.s32.totalorder %s223, %s224
      %p233 = scmp.eq.s32.totalorder %s40, 0
      %p234 = por %p232, %p233
      %p235 = scmp.ne.s32.totalorder %s223, %s224
      %p236 = scmp.eq.s32.totalorder %s41, 1
      %p237 = por %p235, %p236
      %p239 = scmp.ne.s32.totalorder %s224, %s238
      %p240 = scmp.eq.s32.totalorder %s41, 0
      %p241 = por %p239, %p240
      %s243 = sadd.s32 %s242, 1
      %p246 = scmp.eq.s32.totalorder %s35, 1
      %p247 = scmp.ne.s32.totalorder %s242, %s244
      %p248 = scmp.eq.s32.totalorder %s35, 0
      %p249 = por %p247, %p248
      %p250 = scmp.ne.s32.totalorder %s242, %s244
      %p251 = scmp.eq.s32.totalorder %s40, 1
      %p252 = por %p250, %p251
      %p253 = scmp.ne.s32.totalorder %s244, %s245
      %p254 = scmp.eq.s32.totalorder %s40, 0
      %p255 = por %p253, %p254
      %p256 = scmp.ne.s32.totalorder %s244, %s245
      %p257 = scmp.eq.s32.totalorder %s41, 1
      %p258 = por %p256, %p257
      %p260 = scmp.ne.s32.totalorder %s245, %s259
      %p261 = scmp.eq.s32.totalorder %s41, 0
      %p262 = por %p260, %p261
      %s264 = sadd.s32 %s263, 1
      %p267 = scmp.eq.s32.totalorder %s35, 1
      %p268 = scmp.ne.s32.totalorder %s263, %s265
      %p269 = scmp.eq.s32.totalorder %s35, 0
      %p270 = por %p268, %p269
      %p271 = scmp.ne.s32.totalorder %s263, %s265
      %p272 = scmp.eq.s32.totalorder %s40, 1
      %p273 = por %p271, %p272
      %p274 = scmp.ne.s32.totalorder %s265, %s266
      %p275 = scmp.eq.s32.totalorder %s40, 0
      %p276 = por %p274, %p275
      %p277 = scmp.ne.s32.totalorder %s265, %s266
      %p278 = scmp.eq.s32.totalorder %s41, 1
      %p279 = por %p277, %p278
      %p281 = scmp.ne.s32.totalorder %s266, %s280
      %p282 = scmp.eq.s32.totalorder %s41, 0
      %p283 = por %p281, %p282
      %s285 = sadd.s32 %s284, 1
      %p288 = scmp.eq.s32.totalorder %s35, 1
      %p289 = scmp.ne.s32.totalorder %s284, %s286
      %p290 = scmp.eq.s32.totalorder %s35, 0
      %p291 = por %p289, %p290
      %p292 = scmp.ne.s32.totalorder %s284, %s286
      %p293 = scmp.eq.s32.totalorder %s40, 1
      %p294 = por %p292, %p293
      %p295 = scmp.ne.s32.totalorder %s286, %s287
      %p296 = scmp.eq.s32.totalorder %s40, 0
      %p297 = por %p295, %p296
      %p298 = scmp.ne.s32.totalorder %s286, %s287
      %p299 = scmp.eq.s32.totalorder %s41, 1
      %p300 = por %p298, %p299
      %p302 = scmp.ne.s32.totalorder %s287, %s301
      %p303 = scmp.eq.s32.totalorder %s41, 0
      %p304 = por %p302, %p303
      %s306 = sadd.s32 %s305, 1
      %p309 = scmp.eq.s32.totalorder %s35, 1
      %p310 = scmp.ne.s32.totalorder %s305, %s307
      %p311 = scmp.eq.s32.totalorder %s35, 0
      %p312 = por %p310, %p311
      %p313 = scmp.ne.s32.totalorder %s305, %s307
      %p314 = scmp.eq.s32.totalorder %s40, 1
      %p315 = por %p313, %p314
      %p316 = scmp.ne.s32.totalorder %s307, %s308
      %p317 = scmp.eq.s32.totalorder %s40, 0
      %p318 = por %p316, %p317
      %p319 = scmp.ne.s32.totalorder %s307, %s308
      %p320 = scmp.eq.s32.totalorder %s41, 1
      %p321 = por %p319, %p320
      %p323 = scmp.ne.s32.totalorder %s308, %s322
      %p324 = scmp.eq.s32.totalorder %s41, 0
      %p325 = por %p323, %p324
      %s327 = sadd.s32 %s326, 1
      %p330 = scmp.eq.s32.totalorder %s35, 1
      %p331 = scmp.ne.s32.totalorder %s326, %s328
      %p332 = scmp.eq.s32.totalorder %s35, 0
      %p333 = por %p331, %p332
      %p334 = scmp.ne.s32.totalorder %s326, %s328
      %p335 = scmp.eq.s32.totalorder %s40, 1
      %p336 = por %p334, %p335
      %p337 = scmp.ne.s32.totalorder %s328, %s329
      %p338 = scmp.eq.s32.totalorder %s40, 0
      %p339 = por %p337, %p338
      %p340 = scmp.ne.s32.totalorder %s328, %s329
      %p341 = scmp.eq.s32.totalorder %s41, 1
      %p342 = por %p340, %p341
      %p344 = scmp.ne.s32.totalorder %s329, %s343
      %p345 = scmp.eq.s32.totalorder %s41, 0
      %p346 = por %p344, %p345
      %s348 = sadd.s32 %s347, 1
      %p351 = scmp.eq.s32.totalorder %s35, 1
      %p352 = scmp.ne.s32.totalorder %s347, %s349
      %p353 = scmp.eq.s32.totalorder %s35, 0
      %p354 = por %p352, %p353
      %p355 = scmp.ne.s32.totalorder %s347, %s349
      %p356 = scmp.eq.s32.totalorder %s40, 1
      %p357 = por %p355, %p356
      %p358 = scmp.ne.s32.totalorder %s349, %s350
      %p359 = scmp.eq.s32.totalorder %s40, 0
      %p360 = por %p358, %p359
      %p361 = scmp.ne.s32.totalorder %s349, %s350
      %p362 = scmp.eq.s32.totalorder %s41, 1
      %p363 = por %p361, %p362
      %p365 = scmp.ne.s32.totalorder %s350, %s364
      %p366 = scmp.eq.s32.totalorder %s41, 0
      %p367 = por %p365, %p366
      %s369 = sadd.s32 %s368, 1
      %p372 = scmp.eq.s32.totalorder %s35, 1
      %p373 = scmp.ne.s32.totalorder %s368, %s370
      %p374 = scmp.eq.s32.totalorder %s35, 0
      %p375 = por %p373, %p374
      %p376 = scmp.ne.s32.totalorder %s368, %s370
      %p377 = scmp.eq.s32.totalorder %s40, 1
      %p378 = por %p376, %p377
      %p379 = scmp.ne.s32.totalorder %s370, %s371
      %p380 = scmp.eq.s32.totalorder %s40, 0
      %p381 = por %p379, %p380
      %p382 = scmp.ne.s32.totalorder %s370, %s371
      %p383 = scmp.eq.s32.totalorder %s41, 1
      %p384 = por %p382, %p383
      %p386 = scmp.ne.s32.totalorder %s371, %s385
      %p387 = scmp.eq.s32.totalorder %s41, 0
      %p388 = por %p386, %p387
      %s390 = sadd.s32 %s389, 1
      %p393 = scmp.eq.s32.totalorder %s35, 1
      %p394 = scmp.ne.s32.totalorder %s389, %s391
      %p395 = scmp.eq.s32.totalorder %s35, 0
      %p396 = por %p394, %p395
      %p397 = scmp.ne.s32.totalorder %s389, %s391
      %p398 = scmp.eq.s32.totalorder %s40, 1
      %p399 = por %p397, %p398
      %p400 = scmp.ne.s32.totalorder %s391, %s392
      %p401 = scmp.eq.s32.totalorder %s40, 0
      %p402 = por %p400, %p401
      %p403 = scmp.ne.s32.totalorder %s391, %s392
      %p404 = scmp.eq.s32.totalorder %s41, 1
      %p405 = por %p403, %p404
      %p407 = scmp.ne.s32.totalorder %s392, %s406
      %p408 = scmp.eq.s32.totalorder %s41, 0
      %p409 = por %p407, %p408
      %s411 = sadd.s32 %s410, 1
      %p414 = scmp.eq.s32.totalorder %s35, 1
      %p415 = scmp.ne.s32.totalorder %s410, %s412
      %p416 = scmp.eq.s32.totalorder %s35, 0
      %p417 = por %p415, %p416
      %p418 = scmp.ne.s32.totalorder %s410, %s412
      %p419 = scmp.eq.s32.totalorder %s40, 1
      %p420 = por %p418, %p419
      %p421 = scmp.ne.s32.totalorder %s412, %s413
      %p422 = scmp.eq.s32.totalorder %s40, 0
      %p423 = por %p421, %p422
      %p424 = scmp.ne.s32.totalorder %s412, %s413
      %p425 = scmp.eq.s32.totalorder %s41, 1
      %p426 = por %p424, %p425
      %p428 = scmp.ne.s32.totalorder %s413, %s427
      %p429 = scmp.eq.s32.totalorder %s41, 0
      %p430 = por %p428, %p429
      %s432 = sadd.s32 %s431, 1
      %p435 = scmp.eq.s32.totalorder %s35, 1
      %p436 = scmp.ne.s32.totalorder %s431, %s433
      %p437 = scmp.eq.s32.totalorder %s35, 0
      %p438 = por %p436, %p437
      %p439 = scmp.ne.s32.totalorder %s431, %s433
      %p440 = scmp.eq.s32.totalorder %s40, 1
      %p441 = por %p439, %p440
      %p442 = scmp.ne.s32.totalorder %s433, %s434
      %p443 = scmp.eq.s32.totalorder %s40, 0
      %p444 = por %p442, %p443
      %p445 = scmp.ne.s32.totalorder %s433, %s434
      %p446 = scmp.eq.s32.totalorder %s41, 1
      %p447 = por %p445, %p446
      %p449 = scmp.ne.s32.totalorder %s434, %s448
      %p450 = scmp.eq.s32.totalorder %s41, 0
      %p451 = por %p449, %p450
      %s453 = sadd.s32 %s452, 1
      %p456 = scmp.eq.s32.totalorder %s35, 1
      %p457 = scmp.ne.s32.totalorder %s452, %s454
      %p458 = scmp.eq.s32.totalorder %s35, 0
      %p459 = por %p457, %p458
      %p460 = scmp.ne.s32.totalorder %s452, %s454
      %p461 = scmp.eq.s32.totalorder %s40, 1
      %p462 = por %p460, %p461
      %p463 = scmp.ne.s32.totalorder %s454, %s455
      %p464 = scmp.eq.s32.totalorder %s40, 0
      %p465 = por %p463, %p464
      %p466 = scmp.ne.s32.totalorder %s454, %s455
      %p467 = scmp.eq.s32.totalorder %s41, 1
      %p468 = por %p466, %p467
      %p470 = scmp.ne.s32.totalorder %s455, %s469
      %p471 = scmp.eq.s32.totalorder %s41, 0
      %p472 = por %p470, %p471
      %s473 = ssub.s32 %s35, %s42
      %p474 = scmp.eq.s32.totalorder %s473, 0
      %s476 = sadd.s32 %s475, 1
      %s477 = scalar_select %p474, %s475, %s476
      %p480 = pneg %p474
      %p481 = scmp.eq.s32.totalorder %s35, 1
      %p482 = por %p480, %p481
      %p483 = scmp.ne.s32.totalorder %s475, %s478
      %p484 = scmp.eq.s32.totalorder %s35, 0
      %p485 = por %p483, %p484
      %p486 = scmp.ne.s32.totalorder %s475, %s478
      %p487 = scmp.eq.s32.totalorder %s40, 1
      %p488 = por %p486, %p487
      %p489 = scmp.ne.s32.totalorder %s478, %s479
      %p490 = scmp.eq.s32.totalorder %s40, 0
      %p491 = por %p489, %p490
      %p492 = scmp.ne.s32.totalorder %s478, %s479
      %p493 = scmp.eq.s32.totalorder %s41, 1
      %p494 = por %p492, %p493
      %p496 = scmp.ne.s32.totalorder %s479, %s495
      %p497 = scmp.eq.s32.totalorder %s41, 0
      %p498 = por %p496, %p497
      %p499 = scmp.le.s32.totalorder 1, %s35
      %p500 = scmp.lt.s32.totalorder %s35, 3
      %p501 = pnand %p499, %p500
      %p502 = pneg %p501
      // Predicated region
      $region9: #{tpu_custom_call.1} parent=5 // pred_check
        _
      $region10: #{tpu_custom_call.1} parent=5 // pred_check_branch
        %504 = sbr.rel (%p501) target = $region12
      $region11: #{tpu_custom_call.1} parent=5 // pred_region
        %s505 = ssub.s32 %s35, 1
        // Predicated region
        $region13: #{tpu_custom_call.1} parent=11 // pred_check
          %p506 = pneg %p108
        $region14: #{tpu_custom_call.1} parent=11 // pred_check_branch
          %508 = sbr.rel (%p506) target = $region16
        $region15: #{tpu_custom_call.1} parent=11 // pred_region
          %510 = vsyncadd [#allocation3], 0
          %s512 = sshll.u32 %s2, 4
          %s513 = int_to_ptr.hbm [resolvable:$true] %s512
          %s514 = sshll.u32 [#allocation2], 4
          %s515 = int_to_ptr.vmem [resolvable:$true] %s514
          %517 = dma.hbm_to_vmem [thread:$0]  %s513, 128, %s515, [#allocation3]
        $region16: #{tpu_custom_call.1} parent=11 // pred_fallthru
          _
        // Predicated region
        $region17: #{tpu_custom_call.1} parent=11 // pred_check
          %p518 = pneg %p129
        $region18: #{tpu_custom_call.1} parent=11 // pred_check_branch
          %520 = sbr.rel (%p518) target = $region20
        $region19: #{tpu_custom_call.1} parent=11 // pred_region
          %522 = vsyncadd [#allocation6], 0
          %s524 = sshll.u32 %s3, 4
          %s525 = int_to_ptr.hbm [resolvable:$true] %s524
          %s526 = sshll.u32 [#allocation5], 4
          %s527 = int_to_ptr.vmem [resolvable:$true] %s526
          %529 = dma.hbm_to_vmem [thread:$0]  %s525, 128, %s527, [#allocation6]
        $region20: #{tpu_custom_call.1} parent=11 // pred_fallthru
          _
        // Predicated region
        $region21: #{tpu_custom_call.1} parent=11 // pred_check
          %p530 = pneg %p150
        $region22: #{tpu_custom_call.1} parent=11 // pred_check_branch
          %532 = sbr.rel (%p530) target = $region24
        $region23: #{tpu_custom_call.1} parent=11 // pred_region
          _
        $region24: #{tpu_custom_call.1} parent=11 // pred_fallthru
          _
        // Predicated region
        $region25: #{tpu_custom_call.1} parent=11 // pred_check
          %p533 = pneg %p171
        $region26: #{tpu_custom_call.1} parent=11 // pred_check_branch
          %535 = sbr.rel (%p533) target = $region28
        $region27: #{tpu_custom_call.1} parent=11 // pred_region
          %537 = vsyncadd [#allocation6], 0
          %s539 = sshll.u32 %s5, 4
          %s540 = int_to_ptr.hbm [resolvable:$true] %s539
          %s541 = sshll.u32 [#allocation7], 4
          %s542 = int_to_ptr.vmem [resolvable:$true] %s541
          %544 = dma.hbm_to_vmem [thread:$0]  %s540, 16, %s542, [#allocation6]
        $region28: #{tpu_custom_call.1} parent=11 // pred_fallthru
          _
        // Predicated region
        $region29: #{tpu_custom_call.1} parent=11 // pred_check
          %p545 = pneg %p192
        $region30: #{tpu_custom_call.1} parent=11 // pred_check_branch
          %547 = sbr.rel (%p545) target = $region32
        $region31: #{tpu_custom_call.1} parent=11 // pred_region
          %549 = vsyncadd [#allocation9], 0
          %s550 = sshll.u32 %s6, 4
          %s551 = int_to_ptr.hbm [resolvable:$true] %s550
          %s552 = sshll.u32 [#allocation8], 4
          %s553 = int_to_ptr.vmem [resolvable:$true] %s552
          %558 = dma.hbm_to_vmem [thread:$0]  %s551, 256, %s553, [#allocation9], 64, 64, 4
        $region32: #{tpu_custom_call.1} parent=11 // pred_fallthru
          _
        // Predicated region
        $region33: #{tpu_custom_call.1} parent=11 // pred_check
          %p559 = pneg %p213
        $region34: #{tpu_custom_call.1} parent=11 // pred_check_branch
          %561 = sbr.rel (%p559) target = $region36
        $region35: #{tpu_custom_call.1} parent=11 // pred_region
          %563 = vsyncadd [#allocation9], 0
          %s565 = sshll.u32 %s7, 4
          %s566 = int_to_ptr.hbm [resolvable:$true] %s565
          %s567 = sshll.u32 [#allocation10], 4
          %s568 = int_to_ptr.vmem [resolvable:$true] %s567
          %570 = dma.hbm_to_vmem [thread:$0]  %s566, 16, %s568, [#allocation9]
        $region36: #{tpu_custom_call.1} parent=11 // pred_fallthru
          _
        // Predicated region
        $region37: #{tpu_custom_call.1} parent=11 // pred_check
          %p571 = pneg %p234
        $region38: #{tpu_custom_call.1} parent=11 // pred_check_branch
          %573 = sbr.rel (%p571) target = $region40
        $region39: #{tpu_custom_call.1} parent=11 // pred_region
          %575 = vsyncadd [#allocation12], 0
          %s576 = sshll.u32 %s8, 4
          %s577 = int_to_ptr.hbm [resolvable:$true] %s576
          %s578 = sshll.u32 [#allocation11], 4
          %s579 = int_to_ptr.vmem [resolvable:$true] %s578
          %584 = dma.hbm_to_vmem [thread:$0]  %s577, 256, %s579, [#allocation12], 64, 64, 4
        $region40: #{tpu_custom_call.1} parent=11 // pred_fallthru
          _
        // Predicated region
        $region41: #{tpu_custom_call.1} parent=11 // pred_check
          %p585 = pneg %p255
        $region42: #{tpu_custom_call.1} parent=11 // pred_check_branch
          %587 = sbr.rel (%p585) target = $region44
        $region43: #{tpu_custom_call.1} parent=11 // pred_region
          %589 = vsyncadd [#allocation12], 0
          %s591 = sshll.u32 %s9, 4
          %s592 = int_to_ptr.hbm [resolvable:$true] %s591
          %s593 = sshll.u32 [#allocation13], 4
          %s594 = int_to_ptr.vmem [resolvable:$true] %s593
          %596 = dma.hbm_to_vmem [thread:$0]  %s592, 16, %s594, [#allocation12]
        $region44: #{tpu_custom_call.1} parent=11 // pred_fallthru
          _
        // Predicated region
        $region45: #{tpu_custom_call.1} parent=11 // pred_check
          %p597 = pneg %p276
        $region46: #{tpu_custom_call.1} parent=11 // pred_check_branch
          %599 = sbr.rel (%p597) target = $region48
        $region47: #{tpu_custom_call.1} parent=11 // pred_region
          %601 = vsyncadd [#allocation15], 0
          %s602 = sshll.u32 %s10, 4
          %s603 = int_to_ptr.hbm [resolvable:$true] %s602
          %s604 = sshll.u32 [#allocation14], 4
          %s605 = int_to_ptr.vmem [resolvable:$true] %s604
          %610 = dma.hbm_to_vmem [thread:$0]  %s603, 256, %s605, [#allocation15], 64, 64, 4
        $region48: #{tpu_custom_call.1} parent=11 // pred_fallthru
          _
        // Predicated region
        $region49: #{tpu_custom_call.1} parent=11 // pred_check
          %p611 = pneg %p297
        $region50: #{tpu_custom_call.1} parent=11 // pred_check_branch
          %613 = sbr.rel (%p611) target = $region52
        $region51: #{tpu_custom_call.1} parent=11 // pred_region
          _
        $region52: #{tpu_custom_call.1} parent=11 // pred_fallthru
          _
        // Predicated region
        $region53: #{tpu_custom_call.1} parent=11 // pred_check
          %p614 = pneg %p318
        $region54: #{tpu_custom_call.1} parent=11 // pred_check_branch
          %616 = sbr.rel (%p614) target = $region56
        $region55: #{tpu_custom_call.1} parent=11 // pred_region
          %618 = vsyncadd [#allocation15], 0
          %s619 = sshll.u32 %s12, 4
          %s620 = int_to_ptr.hbm [resolvable:$true] %s619
          %s621 = sshll.u32 [#allocation16], 4
          %s622 = int_to_ptr.vmem [resolvable:$true] %s621
          %627 = dma.hbm_to_vmem [thread:$0]  %s620, 256, %s622, [#allocation15], 64, 64, 4
        $region56: #{tpu_custom_call.1} parent=11 // pred_fallthru
          _
        // Predicated region
        $region57: #{tpu_custom_call.1} parent=11 // pred_check
          %p628 = pneg %p339
        $region58: #{tpu_custom_call.1} parent=11 // pred_check_branch
          %630 = sbr.rel (%p628) target = $region60
        $region59: #{tpu_custom_call.1} parent=11 // pred_region
          _
        $region60: #{tpu_custom_call.1} parent=11 // pred_fallthru
          _
        // Predicated region
        $region61: #{tpu_custom_call.1} parent=11 // pred_check
          %p631 = pneg %p360
        $region62: #{tpu_custom_call.1} parent=11 // pred_check_branch
          %633 = sbr.rel (%p631) target = $region64
        $region63: #{tpu_custom_call.1} parent=11 // pred_region
          %635 = vsyncadd [#allocation18], 0
          %s636 = sshll.u32 %s14, 4
          %s637 = int_to_ptr.hbm [resolvable:$true] %s636
          %s638 = sshll.u32 [#allocation17], 4
          %s639 = int_to_ptr.vmem [resolvable:$true] %s638
          %644 = dma.hbm_to_vmem [thread:$0]  %s637, 256, %s639, [#allocation18], 64, 64, 4
        $region64: #{tpu_custom_call.1} parent=11 // pred_fallthru
          _
        // Predicated region
        $region65: #{tpu_custom_call.1} parent=11 // pred_check
          %p645 = pneg %p381
        $region66: #{tpu_custom_call.1} parent=11 // pred_check_branch
          %647 = sbr.rel (%p645) target = $region68
        $region67: #{tpu_custom_call.1} parent=11 // pred_region
          _
        $region68: #{tpu_custom_call.1} parent=11 // pred_fallthru
          _
        // Predicated region
        $region69: #{tpu_custom_call.1} parent=11 // pred_check
          %p648 = pneg %p402
        $region70: #{tpu_custom_call.1} parent=11 // pred_check_branch
          %650 = sbr.rel (%p648) target = $region72
        $region71: #{tpu_custom_call.1} parent=11 // pred_region
          _
        $region72: #{tpu_custom_call.1} parent=11 // pred_fallthru
          _
        // Predicated region
        $region73: #{tpu_custom_call.1} parent=11 // pred_check
          %p651 = pneg %p423
        $region74: #{tpu_custom_call.1} parent=11 // pred_check_branch
          %653 = sbr.rel (%p651) target = $region76
        $region75: #{tpu_custom_call.1} parent=11 // pred_region
          _
        $region76: #{tpu_custom_call.1} parent=11 // pred_fallthru
          _
        // Predicated region
        $region77: #{tpu_custom_call.1} parent=11 // pred_check
          %p654 = pneg %p444
        $region78: #{tpu_custom_call.1} parent=11 // pred_check_branch
          %656 = sbr.rel (%p654) target = $region80
        $region79: #{tpu_custom_call.1} parent=11 // pred_region
          _
        $region80: #{tpu_custom_call.1} parent=11 // pred_fallthru
          _
        // Predicated region
        $region81: #{tpu_custom_call.1} parent=11 // pred_check
          %p657 = pneg %p465
        $region82: #{tpu_custom_call.1} parent=11 // pred_check_branch
          %659 = sbr.rel (%p657) target = $region84
        $region83: #{tpu_custom_call.1} parent=11 // pred_region
          _
        $region84: #{tpu_custom_call.1} parent=11 // pred_fallthru
          _
      $region12: #{tpu_custom_call.1} parent=5 // pred_fallthru
        _
      %p660 = scmp.lt.s32.totalorder %s35, 2
      // Predicated region
      $region85: #{tpu_custom_call.1} parent=5 // pred_check
        %p661 = pneg %p660
      $region86: #{tpu_custom_call.1} parent=5 // pred_check_branch
        %663 = sbr.rel (%p661) target = $region88
      $region87: #{tpu_custom_call.1} parent=5 // pred_region
        // Predicated region
        $region89: #{tpu_custom_call.1} parent=87 // pred_check
          %p664 = pneg %p55
        $region90: #{tpu_custom_call.1} parent=87 // pred_check_branch
          %666 = sbr.rel (%p664) target = $region92
        $region91: #{tpu_custom_call.1} parent=87 // pred_region
          %p667 = scmp.lt.s32.totalorder %s35, 1
          %s668 = scalar_select %p667, %s35, 1
          %s669 = smul.addr %s668, 8
          %s670 = scalar_lea.vmem %s0, %s669
        $region92: #{tpu_custom_call.1} parent=87 // pred_fallthru
          _
        // Predicated region
        $region93: #{tpu_custom_call.1} parent=87 // pred_check
          %p671 = pneg %p81
        $region94: #{tpu_custom_call.1} parent=87 // pred_check_branch
          %673 = sbr.rel (%p671) target = $region96
        $region95: #{tpu_custom_call.1} parent=87 // pred_region
          %p674 = scmp.lt.s32.totalorder %s35, 1
          %s675 = scalar_select %p674, %s35, 1
          %s676 = smul.addr %s675, 8
          %s677 = scalar_lea.vmem %s1, %s676
        $region96: #{tpu_custom_call.1} parent=87 // pred_fallthru
          _
      $region88: #{tpu_custom_call.1} parent=5 // pred_fallthru
        _
      %p678 = scmp.le.s32.totalorder 1, %s35
      %p679 = scmp.lt.s32.totalorder %s35, 3
      %p680 = pnand %p678, %p679
      %p681 = pneg %p680
      // Predicated region
      $region97: #{tpu_custom_call.1} parent=5 // pred_check
        _
      $region98: #{tpu_custom_call.1} parent=5 // pred_check_branch
        %683 = sbr.rel (%p680) target = $region100
      $region99: #{tpu_custom_call.1} parent=5 // pred_region
        %s684 = ssub.s32 %s35, 1
        // Predicated region
        $region101: #{tpu_custom_call.1} parent=99 // pred_check
          %p685 = pneg %p108
        $region102: #{tpu_custom_call.1} parent=99 // pred_check_branch
          %687 = sbr.rel (%p685) target = $region104
        $region103: #{tpu_custom_call.1} parent=99 // pred_region
          %689 = dma.done [#allocation3], 128
        $region104: #{tpu_custom_call.1} parent=99 // pred_fallthru
          _
        // Predicated region
        $region105: #{tpu_custom_call.1} parent=99 // pred_check
          %p690 = pneg %p129
        $region106: #{tpu_custom_call.1} parent=99 // pred_check_branch
          %692 = sbr.rel (%p690) target = $region108
        $region107: #{tpu_custom_call.1} parent=99 // pred_region
          %694 = dma.done [#allocation6], 128
        $region108: #{tpu_custom_call.1} parent=99 // pred_fallthru
          _
        // Predicated region
        $region109: #{tpu_custom_call.1} parent=99 // pred_check
          %p695 = pneg %p171
        $region110: #{tpu_custom_call.1} parent=99 // pred_check_branch
          %697 = sbr.rel (%p695) target = $region112
        $region111: #{tpu_custom_call.1} parent=99 // pred_region
          %699 = dma.done [#allocation6], 16
        $region112: #{tpu_custom_call.1} parent=99 // pred_fallthru
          _
        // Predicated region
        $region113: #{tpu_custom_call.1} parent=99 // pred_check
          %p700 = pneg %p192
        $region114: #{tpu_custom_call.1} parent=99 // pred_check_branch
          %702 = sbr.rel (%p700) target = $region116
        $region115: #{tpu_custom_call.1} parent=99 // pred_region
          %704 = dma.done [#allocation9], 256
        $region116: #{tpu_custom_call.1} parent=99 // pred_fallthru
          _
        // Predicated region
        $region117: #{tpu_custom_call.1} parent=99 // pred_check
          %p705 = pneg %p213
        $region118: #{tpu_custom_call.1} parent=99 // pred_check_branch
          %707 = sbr.rel (%p705) target = $region120
        $region119: #{tpu_custom_call.1} parent=99 // pred_region
          %709 = dma.done [#allocation9], 16
        $region120: #{tpu_custom_call.1} parent=99 // pred_fallthru
          _
        // Predicated region
        $region121: #{tpu_custom_call.1} parent=99 // pred_check
          %p710 = pneg %p234
        $region122: #{tpu_custom_call.1} parent=99 // pred_check_branch
          %712 = sbr.rel (%p710) target = $region124
        $region123: #{tpu_custom_call.1} parent=99 // pred_region
          %714 = dma.done [#allocation12], 256
        $region124: #{tpu_custom_call.1} parent=99 // pred_fallthru
          _
        // Predicated region
        $region125: #{tpu_custom_call.1} parent=99 // pred_check
          %p715 = pneg %p255
        $region126: #{tpu_custom_call.1} parent=99 // pred_check_branch
          %717 = sbr.rel (%p715) target = $region128
        $region127: #{tpu_custom_call.1} parent=99 // pred_region
          %719 = dma.done [#allocation12], 16
        $region128: #{tpu_custom_call.1} parent=99 // pred_fallthru
          _
        // Predicated region
        $region129: #{tpu_custom_call.1} parent=99 // pred_check
          %p720 = pneg %p276
        $region130: #{tpu_custom_call.1} parent=99 // pred_check_branch
          %722 = sbr.rel (%p720) target = $region132
        $region131: #{tpu_custom_call.1} parent=99 // pred_region
          %724 = dma.done [#allocation15], 256
        $region132: #{tpu_custom_call.1} parent=99 // pred_fallthru
          _
        // Predicated region
        $region133: #{tpu_custom_call.1} parent=99 // pred_check
          %p725 = pneg %p318
        $region134: #{tpu_custom_call.1} parent=99 // pred_check_branch
          %727 = sbr.rel (%p725) target = $region136
        $region135: #{tpu_custom_call.1} parent=99 // pred_region
          %729 = dma.done [#allocation15], 256
        $region136: #{tpu_custom_call.1} parent=99 // pred_fallthru
          _
        // Predicated region
        $region137: #{tpu_custom_call.1} parent=99 // pred_check
          %p730 = pneg %p360
        $region138: #{tpu_custom_call.1} parent=99 // pred_check_branch
          %732 = sbr.rel (%p730) target = $region140
        $region139: #{tpu_custom_call.1} parent=99 // pred_region
          %734 = dma.done [#allocation18], 256
        $region140: #{tpu_custom_call.1} parent=99 // pred_fallthru
          _
        %p735 = scmp.lt.s32.totalorder %s40, 1
        %s736 = scalar_select %p735, %s40, 1
        %s737 = smul.addr %s736, 8
        %s738 = scalar_lea.vmem %s0, %s737
        %p739 = pneg %p61
        %p740 = pneg %p58
        %p741 = scmp.lt.s32.totalorder %s40, 1
        %s742 = scalar_select %p741, %s40, 1
        %s743 = smul.addr %s742, 8
        %s744 = scalar_lea.vmem %s1, %s743
        %p745 = pneg %p87
        %p746 = pneg %p84
        %p747 = pneg %p108
        %p748 = pneg %p105
        %p749 = pneg %p129
        %p750 = pneg %p126
        %p751 = pneg %p150
        %p752 = pneg %p147
        %p753 = pneg %p171
        %p754 = pneg %p168
        %p755 = pneg %p192
        %p756 = pneg %p189
        %p757 = pneg %p213
        %p758 = pneg %p210
        %p759 = pneg %p234
        %p760 = pneg %p231
        %p761 = pneg %p255
        %p762 = pneg %p252
        %p763 = pneg %p276
        %p764 = pneg %p273
        %p765 = pneg %p297
        %p766 = pneg %p294
        %p767 = pneg %p318
        %p768 = pneg %p315
        %p769 = pneg %p339
        %p770 = pneg %p336
        %p771 = pneg %p360
        %p772 = pneg %p357
        %p773 = pneg %p381
        %p774 = pneg %p378
        %p775 = pneg %p402
        %p776 = pneg %p399
        %p777 = pneg %p423
        %p778 = pneg %p420
        %p779 = pneg %p444
        %p780 = pneg %p441
        %p781 = pneg %p465
        %p782 = pneg %p462
        %p783 = pneg %p491
        %p784 = pneg %p488
        %s785 = sand.u32 %s478, 1
        %s786 = scalar_lea.sflag [#allocation4], %s785
        %s787 = sand.u32 %s478, 1
        %s788 = smul.addr %s787, 8
        %s789 = scalar_lea.vmem [#allocation19], %s788
        %p790 = scmp.lt.s32.totalorder %s40, 1
        %s791 = scalar_select %p790, %s40, 1
        %s792 = smul.addr %s791, 8
        %s793 = scalar_lea.vmem %s0, %s792
        %p794 = scmp.lt.s32.totalorder %s40, 1
        %s795 = scalar_select %p794, %s40, 1
        %s796 = smul.addr %s795, 8
        %s797 = scalar_lea.vmem %s1, %s796
        %v799 = vld [vmem:[%s793] sm:$0xff]
        %v800 = vld [vmem:[%s797] sm:$0xff]
        %v801 = vld [vmem:[%s18] sm:$0x7]
        %v802 = vld [vmem:[%s19] sm:$0x7]
        %v803 = vpack.c.bf16 %v799, %v799
        %v804 = vld [vmem:[%s4] sm:$0xf]
        %v805 = vld [vmem:[%s4 + $0x4] sm:$0xf]
        %v806 = vld [vmem:[%s4 + $0x8] sm:$0xf]
        %v807 = vld [vmem:[%s4 + $0xc] sm:$0xf]
        %v808 = vld [vmem:[#allocation7] sm:$0x1]
        %v810 = vperm.slane %v808, 0
        %v816 = vunpack.c.l.b16 %v804
        %v817 = vunpack.c.l.b16 %v805
        %v818 = vunpack.c.l.b16 %v806
        %v819 = vunpack.c.l.b16 %v807
        %v820 = vpack.c.b16 %v817, %v816
        %v821 = vpack.c.b16 %v819, %v818
        %vm824 = vcmask 261120
        %v826 = vsel %vm824, %v803, 0
        %828 = vmatpush.bf16.msra.mxu0 0
        %829 = vmatpush.bf16.msra.mxu0 0
        %830 = vmatpush.bf16.msra.mxu0 0
        %831 = vmatpush.bf16.msra.mxu0 0
        %832 = vmatpush.bf16.msra.mxu0 0
        %833 = vmatpush.bf16.msra.mxu0 0
        %834 = vmatpush.bf16.msra.mxu0 %v821
        %835 = vmatpush.bf16.msra.mxu0 %v820
        %836 = vmatmul.bf16.gmra.mxu0 %v826
        %v837 = vpop.f32.mrf.mxu0
        %v838 = vadd.f32 %v810, %v837
        %v839 = vpop.f32.mrf.mxu0
        %840 = vdwg.mxu0
        %v841 = vld [vmem:[#allocation2] sm:$0xff]
        %v842 = vpack.c.bf16 %v838, %v838
        %v844 = vunpack.c.l.b16 %v842
        %v845 = vpack.c.b16 %v844, %v844
        %846 = vrot.lane.b32.xlu0 %v845, 96
        %v847 = vpop.permute.xlu0 %846
        %vm848 = vcmask 64512
        %v850 = vsel %vm848, %v842, 0
        %v853 = vsel %vm848, %v847, 0
        %855 = vmatpush.bf16.xpose.msra.mxu0 0
        %856 = vmatpush.bf16.xpose.msra.mxu0 0
        %857 = vmatpush.bf16.xpose.msra.mxu0 0
        %858 = vmatpush.bf16.xpose.msra.mxu0 0
        %859 = vmatpush.bf16.xpose.msra.mxu0 0
        %860 = vmatpush.bf16.xpose.msra.mxu0 0
        %861 = vmatpush.bf16.xpose.msra.mxu0 0
        %862 = vmatpush.bf16.xpose.msra.mxu0 %v853
        %863 = vmatmul.bf16.gmra.mxu0 %v850
        %v864 = vpop.f32.mrf.mxu0
        %v865 = vadd.f32 0.0, %v864
        %v866 = vpop.f32.mrf.mxu0
        %867 = vdwg.mxu0
        %v868 = vmul.f32 %v865, 0.35355338
        %vm869 = vcmp.eq.f32.partialorder %v841, 0.0
        %v870 = vsel %vm869, -1e+09, %v868
        %v871 = vsel %vm848, %v870, -inf
        %872 = vmax.xlane.f32.xlu0 %v871
        %v873 = vpop.xlane.xlu0 %872
        %v874 = vsub.f32 %v870, %v873
        %v875 = vmul.f32 %v874, 1.442695
        %v876 = vpow.pop %v875
        %v877 = vsel %vm848, %v876, 0.0
        %878 = vadd.xlane.f32.xlu0 %v877
        %v879 = vpop.xlane.xlu0 %878
        %v880 = vrcp.pop %v879
        %v881 = vmul.f32 %v879, %v880
        %v882 = vsub.f32 1.0, %v881
        %v883 = vmul.f32 %v880, %v882
        %v884 = vadd.f32 %v880, %v883
        %vm885 = vweird.f32 %v879
        %vm886 = vweird.f32 %v880
        %vm887 = vmor %vm885, %vm886
        %v888 = vsel %vm887, %v880, %v884
        %v889 = vand.u32 2147483647, %v879
        %vm890 = vcmp.eq.f32.partialorder %v889, 8.507059e+37
        %v891 = vand.u32 %v879, 2147483648
        %v892 = vor.u32 1.1754944e-38, %v891
        %v893 = vsel %vm890, %v892, %v888
        %v894 = vmul.f32 %v876, %v893
        %v895 = vpack.c.bf16 %v894, %v894
        %896 = vrot.lane.b32.xlu0 %v845, 64
        %v897 = vpop.permute.xlu0 %896
        %v899 = vsel %vm848, %v895, 0
        %vm901 = vcmask 1043456
        %v903 = vsel %vm901, %v897, 0
        %905 = vmatpush.bf16.msra.mxu0 0
        %906 = vmatpush.bf16.msra.mxu0 0
        %907 = vmatpush.bf16.msra.mxu0 0
        %908 = vmatpush.bf16.msra.mxu0 0
        %909 = vmatpush.bf16.msra.mxu0 0
        %910 = vmatpush.bf16.msra.mxu0 0
        %911 = vmatpush.bf16.msra.mxu0 0
        %912 = vmatpush.bf16.msra.mxu0 %v903
        %913 = vmatmul.bf16.gmra.mxu0 %v899
        %v914 = vpop.f32.mrf.mxu0
        %v915 = vadd.f32 0.0, %v914
        %v916 = vpop.f32.mrf.mxu0
        %917 = vdwg.mxu0
        %918 = vrot.lane.b32.xlu0 %v845, 120
        %v919 = vpop.permute.xlu0 %918
        %920 = vrot.lane.b32.xlu0 %v845, 88
        %v921 = vpop.permute.xlu0 %920
        %v923 = vsel %vm848, %v919, 0
        %v926 = vsel %vm848, %v921, 0
        %928 = vmatpush.bf16.xpose.msra.mxu0 0
        %929 = vmatpush.bf16.xpose.msra.mxu0 0
        %930 = vmatpush.bf16.xpose.msra.mxu0 0
        %931 = vmatpush.bf16.xpose.msra.mxu0 0
        %932 = vmatpush.bf16.xpose.msra.mxu0 0
        %933 = vmatpush.bf16.xpose.msra.mxu0 0
        %934 = vmatpush.bf16.xpose.msra.mxu0 0
        %935 = vmatpush.bf16.xpose.msra.mxu0 %v926
        %936 = vmatmul.bf16.gmra.mxu0 %v923
        %v937 = vpop.f32.mrf.mxu0
        %v938 = vadd.f32 0.0, %v937
        %v939 = vpop.f32.mrf.mxu0
        %940 = vdwg.mxu0
        %v941 = vmul.f32 %v938, 0.35355338
        %v942 = vsel %vm869, -1e+09, %v941
        %v943 = vsel %vm848, %v942, -inf
        %944 = vmax.xlane.f32.xlu0 %v943
        %v945 = vpop.xlane.xlu0 %944
        %v946 = vsub.f32 %v942, %v945
        %v947 = vmul.f32 %v946, 1.442695
        %v948 = vpow.pop %v947
        %v949 = vsel %vm848, %v948, 0.0
        %950 = vadd.xlane.f32.xlu0 %v949
        %v951 = vpop.xlane.xlu0 %950
        %v952 = vrcp.pop %v951
        %v953 = vmul.f32 %v951, %v952
        %v954 = vsub.f32 1.0, %v953
        %v955 = vmul.f32 %v952, %v954
        %v956 = vadd.f32 %v952, %v955
        %vm957 = vweird.f32 %v951
        %vm958 = vweird.f32 %v952
        %vm959 = vmor %vm957, %vm958
        %v960 = vsel %vm959, %v952, %v956
        %v961 = vand.u32 2147483647, %v951
        %vm962 = vcmp.eq.f32.partialorder %v961, 8.507059e+37
        %v963 = vand.u32 %v951, 2147483648
        %v964 = vor.u32 1.1754944e-38, %v963
        %v965 = vsel %vm962, %v964, %v960
        %v966 = vmul.f32 %v948, %v965
        %v967 = vpack.c.bf16 %v966, %v966
        %968 = vrot.lane.b32.xlu0 %v845, 56
        %v969 = vpop.permute.xlu0 %968
        %v971 = vsel %vm848, %v967, 0
        %v974 = vsel %vm901, %v969, 0
        %976 = vmatpush.bf16.msra.mxu0 0
        %977 = vmatpush.bf16.msra.mxu0 0
        %978 = vmatpush.bf16.msra.mxu0 0
        %979 = vmatpush.bf16.msra.mxu0 0
        %980 = vmatpush.bf16.msra.mxu0 0
        %981 = vmatpush.bf16.msra.mxu0 0
        %982 = vmatpush.bf16.msra.mxu0 0
        %983 = vmatpush.bf16.msra.mxu0 %v974
        %984 = vmatmul.bf16.gmra.mxu0 %v971
        %v985 = vpop.f32.mrf.mxu0
        %v986 = vadd.f32 0.0, %v985
        %v987 = vpop.f32.mrf.mxu0
        %988 = vdwg.mxu0
        %989 = vrot.lane.b32.xlu0 %v845, 112
        %v990 = vpop.permute.xlu0 %989
        %991 = vrot.lane.b32.xlu0 %v845, 80
        %v992 = vpop.permute.xlu0 %991
        %v994 = vsel %vm848, %v990, 0
        %v997 = vsel %vm848, %v992, 0
        %999 = vmatpush.bf16.xpose.msra.mxu0 0
        %1000 = vmatpush.bf16.xpose.msra.mxu0 0
        %1001 = vmatpush.bf16.xpose.msra.mxu0 0
        %1002 = vmatpush.bf16.xpose.msra.mxu0 0
        %1003 = vmatpush.bf16.xpose.msra.mxu0 0
        %1004 = vmatpush.bf16.xpose.msra.mxu0 0
        %1005 = vmatpush.bf16.xpose.msra.mxu0 0
        %1006 = vmatpush.bf16.xpose.msra.mxu0 %v997
        %1007 = vmatmul.bf16.gmra.mxu0 %v994
        %v1008 = vpop.f32.mrf.mxu0
        %v1009 = vadd.f32 0.0, %v1008
        %v1010 = vpop.f32.mrf.mxu0
        %1011 = vdwg.mxu0
        %v1012 = vmul.f32 %v1009, 0.35355338
        %v1013 = vsel %vm869, -1e+09, %v1012
        %v1014 = vsel %vm848, %v1013, -inf
        %1015 = vmax.xlane.f32.xlu0 %v1014
        %v1016 = vpop.xlane.xlu0 %1015
        %v1017 = vsub.f32 %v1013, %v1016
        %v1018 = vmul.f32 %v1017, 1.442695
        %v1019 = vpow.pop %v1018
        %v1020 = vsel %vm848, %v1019, 0.0
        %1021 = vadd.xlane.f32.xlu0 %v1020
        %v1022 = vpop.xlane.xlu0 %1021
        %v1023 = vrcp.pop %v1022
        %v1024 = vmul.f32 %v1022, %v1023
        %v1025 = vsub.f32 1.0, %v1024
        %v1026 = vmul.f32 %v1023, %v1025
        %v1027 = vadd.f32 %v1023, %v1026
        %vm1028 = vweird.f32 %v1022
        %vm1029 = vweird.f32 %v1023
        %vm1030 = vmor %vm1028, %vm1029
        %v1031 = vsel %vm1030, %v1023, %v1027
        %v1032 = vand.u32 2147483647, %v1022
        %vm1033 = vcmp.eq.f32.partialorder %v1032, 8.507059e+37
        %v1034 = vand.u32 %v1022, 2147483648
        %v1035 = vor.u32 1.1754944e-38, %v1034
        %v1036 = vsel %vm1033, %v1035, %v1031
        %v1037 = vmul.f32 %v1019, %v1036
        %v1038 = vpack.c.bf16 %v1037, %v1037
        %1039 = vrot.lane.b32.xlu0 %v845, 48
        %v1040 = vpop.permute.xlu0 %1039
        %v1042 = vsel %vm848, %v1038, 0
        %v1045 = vsel %vm901, %v1040, 0
        %1047 = vmatpush.bf16.msra.mxu0 0
        %1048 = vmatpush.bf16.msra.mxu0 0
        %1049 = vmatpush.bf16.msra.mxu0 0
        %1050 = vmatpush.bf16.msra.mxu0 0
        %1051 = vmatpush.bf16.msra.mxu0 0
        %1052 = vmatpush.bf16.msra.mxu0 0
        %1053 = vmatpush.bf16.msra.mxu0 0
        %1054 = vmatpush.bf16.msra.mxu0 %v1045
        %1055 = vmatmul.bf16.gmra.mxu0 %v1042
        %v1056 = vpop.f32.mrf.mxu0
        %v1057 = vadd.f32 0.0, %v1056
        %v1058 = vpop.f32.mrf.mxu0
        %1059 = vdwg.mxu0
        %1060 = vrot.lane.b32.xlu0 %v845, 104
        %v1061 = vpop.permute.xlu0 %1060
        %1062 = vrot.lane.b32.xlu0 %v845, 72
        %v1063 = vpop.permute.xlu0 %1062
        %v1065 = vsel %vm848, %v1061, 0
        %v1068 = vsel %vm848, %v1063, 0
        %1070 = vmatpush.bf16.xpose.msra.mxu0 0
        %1071 = vmatpush.bf16.xpose.msra.mxu0 0
        %1072 = vmatpush.bf16.xpose.msra.mxu0 0
        %1073 = vmatpush.bf16.xpose.msra.mxu0 0
        %1074 = vmatpush.bf16.xpose.msra.mxu0 0
        %1075 = vmatpush.bf16.xpose.msra.mxu0 0
        %1076 = vmatpush.bf16.xpose.msra.mxu0 0
        %1077 = vmatpush.bf16.xpose.msra.mxu0 %v1068
        %1078 = vmatmul.bf16.gmra.mxu0 %v1065
        %v1079 = vpop.f32.mrf.mxu0
        %v1080 = vadd.f32 0.0, %v1079
        %v1081 = vpop.f32.mrf.mxu0
        %1082 = vdwg.mxu0
        %v1083 = vmul.f32 %v1080, 0.35355338
        %v1084 = vsel %vm869, -1e+09, %v1083
        %v1085 = vsel %vm848, %v1084, -inf
        %1086 = vmax.xlane.f32.xlu0 %v1085
        %v1087 = vpop.xlane.xlu0 %1086
        %v1088 = vsub.f32 %v1084, %v1087
        %v1089 = vmul.f32 %v1088, 1.442695
        %v1090 = vpow.pop %v1089
        %v1091 = vsel %vm848, %v1090, 0.0
        %1092 = vadd.xlane.f32.xlu0 %v1091
        %v1093 = vpop.xlane.xlu0 %1092
        %v1094 = vrcp.pop %v1093
        %v1095 = vmul.f32 %v1093, %v1094
        %v1096 = vsub.f32 1.0, %v1095
        %v1097 = vmul.f32 %v1094, %v1096
        %v1098 = vadd.f32 %v1094, %v1097
        %vm1099 = vweird.f32 %v1093
        %vm1100 = vweird.f32 %v1094
        %vm1101 = vmor %vm1099, %vm1100
        %v1102 = vsel %vm1101, %v1094, %v1098
        %v1103 = vand.u32 2147483647, %v1093
        %vm1104 = vcmp.eq.f32.partialorder %v1103, 8.507059e+37
        %v1105 = vand.u32 %v1093, 2147483648
        %v1106 = vor.u32 1.1754944e-38, %v1105
        %v1107 = vsel %vm1104, %v1106, %v1102
        %v1108 = vmul.f32 %v1090, %v1107
        %v1109 = vpack.c.bf16 %v1108, %v1108
        %1110 = vrot.lane.b32.xlu0 %v845, 40
        %v1111 = vpop.permute.xlu0 %1110
        %v1113 = vsel %vm848, %v1109, 0
        %v1116 = vsel %vm901, %v1111, 0
        %1118 = vmatpush.bf16.msra.mxu0 0
        %1119 = vmatpush.bf16.msra.mxu0 0
        %1120 = vmatpush.bf16.msra.mxu0 0
        %1121 = vmatpush.bf16.msra.mxu0 0
        %1122 = vmatpush.bf16.msra.mxu0 0
        %1123 = vmatpush.bf16.msra.mxu0 0
        %1124 = vmatpush.bf16.msra.mxu0 0
        %1125 = vmatpush.bf16.msra.mxu0 %v1116
        %1126 = vmatmul.bf16.gmra.mxu0 %v1113
        %v1127 = vpop.f32.mrf.mxu0
        %v1128 = vadd.f32 0.0, %v1127
        %v1129 = vpop.f32.mrf.mxu0
        %1130 = vdwg.mxu0
        %1132 = vrot.lane.b32.xlu0 %v986, 8
        %v1133 = vpop.permute.xlu0 %1132
        %1136 = vrot.lane.b32.xlu0 %v1057, 16
        %v1137 = vpop.permute.xlu0 %1136
        %1140 = vrot.lane.b32.xlu0 %v1128, 24
        %v1141 = vpop.permute.xlu0 %1140
        %v1143 = vsel %vm848, %v915, %v1133
        %vm1144 = vcmask 130048
        %v1145 = vsel %vm1144, %v1143, %v1137
        %vm1146 = vcmask 195584
        %v1147 = vsel %vm1146, %v1145, %v1141
        %v1148 = vpack.c.bf16 %v1147, %v1147
        %v1149 = vld [vmem:[#allocation8] sm:$0xf]
        %v1150 = vld [vmem:[#allocation8 + $0x4] sm:$0xf]
        %v1151 = vld [vmem:[#allocation8 + $0x8] sm:$0xf]
        %v1152 = vld [vmem:[#allocation8 + $0xc] sm:$0xf]
        %v1153 = vld [vmem:[#allocation10] sm:$0x1]
        %v1155 = vperm.slane %v1153, 0
        %v1161 = vunpack.c.l.b16 %v1149
        %v1162 = vunpack.c.l.b16 %v1150
        %v1163 = vunpack.c.l.b16 %v1151
        %v1164 = vunpack.c.l.b16 %v1152
        %v1165 = vpack.c.b16 %v1162, %v1161
        %v1166 = vpack.c.b16 %v1164, %v1163
        %v1170 = vsel %vm824, %v1148, 0
        %1172 = vmatpush.bf16.msra.mxu0 0
        %1173 = vmatpush.bf16.msra.mxu0 0
        %1174 = vmatpush.bf16.msra.mxu0 0
        %1175 = vmatpush.bf16.msra.mxu0 0
        %1176 = vmatpush.bf16.msra.mxu0 0
        %1177 = vmatpush.bf16.msra.mxu0 0
        %1178 = vmatpush.bf16.msra.mxu0 %v1166
        %1179 = vmatpush.bf16.msra.mxu0 %v1165
        %1180 = vmatmul.bf16.gmra.mxu0 %v1170
        %v1181 = vpop.f32.mrf.mxu0
        %v1182 = vadd.f32 %v1155, %v1181
        %v1183 = vpop.f32.mrf.mxu0
        %1184 = vdwg.mxu0
        %v1185 = vadd.f32 %v799, %v1182
        %v1186 = vsel %vm824, %v1185, 0.0
        %1187 = vadd.xlane.f32.xlu0 %v1186
        %v1188 = vpop.xlane.xlu0 %1187
        %v1189 = vrcp.pop 32.0
        %v1190 = vmul.f32 32.0, %v1189
        %v1191 = vsub.f32 1.0, %v1190
        %v1192 = vmul.f32 %v1189, %v1191
        %v1193 = vadd.f32 %v1189, %v1192
        %vm1194 = vweird.f32 %v1189
        %v1195 = vsel %vm1194, %v1189, %v1193
        %v1196 = vmul.f32 %v1188, %v1195
        %v1197 = vsub.f32 %v1185, %v1196
        %v1198 = vmul.f32 %v1197, %v1197
        %v1199 = vsel %vm824, %v1198, 0.0
        %1200 = vadd.xlane.f32.xlu0 %v1199
        %v1201 = vpop.xlane.xlu0 %1200
        %v1202 = vmul.f32 %v1201, %v1195
        %v1203 = vadd.f32 %v1202, 1e-05
        %v1204 = vrsqrt.pop %v1203
        %v1205 = vmul.f32 %v1204, %v1203
        %v1206 = vmul.f32 %v1205, %v1204
        %v1207 = vmul.f32 0.5, %v1206
        %v1208 = vsub.f32 1.5, %v1207
        %v1209 = vmul.f32 %v1204, %v1208
        %vm1210 = vweird.f32 %v1203
        %vm1211 = vweird.f32 %v1204
        %vm1212 = vmor %vm1210, %vm1211
        %v1213 = vsel %vm1212, %v1204, %v1209
        %v1214 = vmul.f32 %v1197, %v1213
        %v1215 = vperm.slane %v801, 0
        %v1216 = vmul.f32 %v1214, %v1215
        %v1217 = vperm.slane %v802, 0
        %v1218 = vadd.f32 %v1216, %v1217
        %v1219 = vpack.c.bf16 %v1218, %v1218
        %v1220 = vld [vmem:[#allocation11] sm:$0xf]
        %v1221 = vld [vmem:[#allocation11 + $0x4] sm:$0xf]
        %v1222 = vld [vmem:[#allocation11 + $0x8] sm:$0xf]
        %v1223 = vld [vmem:[#allocation11 + $0xc] sm:$0xf]
        %v1224 = vld [vmem:[#allocation13] sm:$0x1]
        %v1226 = vperm.slane %v1224, 0
        %v1232 = vunpack.c.l.b16 %v1220
        %v1233 = vunpack.c.l.b16 %v1221
        %v1234 = vunpack.c.l.b16 %v1222
        %v1235 = vunpack.c.l.b16 %v1223
        %v1236 = vpack.c.b16 %v1233, %v1232
        %v1237 = vpack.c.b16 %v1235, %v1234
        %v1241 = vsel %vm824, %v1219, 0
        %1243 = vmatpush.bf16.msra.mxu0 0
        %1244 = vmatpush.bf16.msra.mxu0 0
        %1245 = vmatpush.bf16.msra.mxu0 0
        %1246 = vmatpush.bf16.msra.mxu0 0
        %1247 = vmatpush.bf16.msra.mxu0 0
        %1248 = vmatpush.bf16.msra.mxu0 0
        %1249 = vmatpush.bf16.msra.mxu0 %v1237
        %1250 = vmatpush.bf16.msra.mxu0 %v1236
        %1251 = vmatmul.bf16.gmra.mxu0 %v1241
        %v1252 = vpop.f32.mrf.mxu0
        %v1253 = vadd.f32 %v1226, %v1252
        %v1254 = vpop.f32.mrf.mxu0
        %1255 = vdwg.mxu0
        %v1256 = vpack.c.bf16 %v800, %v800
        %v1257 = vld [vmem:[#allocation14] sm:$0xf]
        %v1258 = vld [vmem:[#allocation14 + $0x4] sm:$0xf]
        %v1259 = vld [vmem:[#allocation14 + $0x8] sm:$0xf]
        %v1260 = vld [vmem:[#allocation14 + $0xc] sm:$0xf]
        %v1261 = vld [vmem:[%s11] sm:$0x1]
        %v1263 = vperm.slane %v1261, 0
        %v1269 = vunpack.c.l.b16 %v1257
        %v1270 = vunpack.c.l.b16 %v1258
        %v1271 = vunpack.c.l.b16 %v1259
        %v1272 = vunpack.c.l.b16 %v1260
        %v1273 = vpack.c.b16 %v1270, %v1269
        %v1274 = vpack.c.b16 %v1272, %v1271
        %v1278 = vsel %vm824, %v1256, 0
        %1280 = vmatpush.bf16.msra.mxu0 0
        %1281 = vmatpush.bf16.msra.mxu0 0
        %1282 = vmatpush.bf16.msra.mxu0 0
        %1283 = vmatpush.bf16.msra.mxu0 0
        %1284 = vmatpush.bf16.msra.mxu0 0
        %1285 = vmatpush.bf16.msra.mxu0 0
        %1286 = vmatpush.bf16.msra.mxu0 %v1274
        %1287 = vmatpush.bf16.msra.mxu0 %v1273
        %1288 = vmatmul.bf16.gmra.mxu0 %v1278
        %v1289 = vpop.f32.mrf.mxu0
        %v1290 = vadd.f32 %v1263, %v1289
        %v1291 = vpop.f32.mrf.mxu0
        %1292 = vdwg.mxu0
        %v1293 = vld [vmem:[#allocation5] sm:$0xff]
        %v1294 = vpack.c.bf16 %v1253, %v1253
        %v1295 = vpack.c.bf16 %v1290, %v1290
        %v1297 = vsel %vm848, %v1294, 0
        %v1300 = vsel %vm848, %v1295, 0
        %1302 = vmatpush.bf16.xpose.msra.mxu0 0
        %1303 = vmatpush.bf16.xpose.msra.mxu0 0
        %1304 = vmatpush.bf16.xpose.msra.mxu0 0
        %1305 = vmatpush.bf16.xpose.msra.mxu0 0
        %1306 = vmatpush.bf16.xpose.msra.mxu0 0
        %1307 = vmatpush.bf16.xpose.msra.mxu0 0
        %1308 = vmatpush.bf16.xpose.msra.mxu0 0
        %1309 = vmatpush.bf16.xpose.msra.mxu0 %v1300
        %1310 = vmatmul.bf16.gmra.mxu0 %v1297
        %v1311 = vpop.f32.mrf.mxu0
        %v1312 = vadd.f32 0.0, %v1311
        %v1313 = vpop.f32.mrf.mxu0
        %1314 = vdwg.mxu0
        %v1315 = vmul.f32 %v1312, 0.35355338
        %vm1316 = vcmp.eq.f32.partialorder %v1293, 0.0
        %v1317 = vsel %vm1316, -1e+09, %v1315
        %v1318 = vsel %vm848, %v1317, -inf
        %1319 = vmax.xlane.f32.xlu0 %v1318
        %v1320 = vpop.xlane.xlu0 %1319
        %v1321 = vsub.f32 %v1317, %v1320
        %v1322 = vmul.f32 %v1321, 1.442695
        %v1323 = vpow.pop %v1322
        %v1324 = vsel %vm848, %v1323, 0.0
        %1325 = vadd.xlane.f32.xlu0 %v1324
        %v1326 = vpop.xlane.xlu0 %1325
        %v1327 = vrcp.pop %v1326
        %v1328 = vmul.f32 %v1326, %v1327
        %v1329 = vsub.f32 1.0, %v1328
        %v1330 = vmul.f32 %v1327, %v1329
        %v1331 = vadd.f32 %v1327, %v1330
        %vm1332 = vweird.f32 %v1326
        %vm1333 = vweird.f32 %v1327
        %vm1334 = vmor %vm1332, %vm1333
        %v1335 = vsel %vm1334, %v1327, %v1331
        %v1336 = vand.u32 2147483647, %v1326
        %vm1337 = vcmp.eq.f32.partialorder %v1336, 8.507059e+37
        %v1338 = vand.u32 %v1326, 2147483648
        %v1339 = vor.u32 1.1754944e-38, %v1338
        %v1340 = vsel %vm1337, %v1339, %v1335
        %v1341 = vmul.f32 %v1323, %v1340
        %v1342 = vpack.c.bf16 %v1341, %v1341
        %v1344 = vunpack.c.l.b16 %v1295
        %v1345 = vpack.c.b16 %v1344, %v1344
        %1346 = vrot.lane.b32.xlu0 %v1345, 96
        %v1347 = vpop.permute.xlu0 %1346
        %v1349 = vsel %vm848, %v1342, 0
        %v1352 = vsel %vm901, %v1347, 0
        %1354 = vmatpush.bf16.msra.mxu0 0
        %1355 = vmatpush.bf16.msra.mxu0 0
        %1356 = vmatpush.bf16.msra.mxu0 0
        %1357 = vmatpush.bf16.msra.mxu0 0
        %1358 = vmatpush.bf16.msra.mxu0 0
        %1359 = vmatpush.bf16.msra.mxu0 0
        %1360 = vmatpush.bf16.msra.mxu0 0
        %1361 = vmatpush.bf16.msra.mxu0 %v1352
        %1362 = vmatmul.bf16.gmra.mxu0 %v1349
        %v1363 = vpop.f32.mrf.mxu0
        %v1364 = vadd.f32 0.0, %v1363
        %v1365 = vpop.f32.mrf.mxu0
        %1366 = vdwg.mxu0
        %v1368 = vunpack.c.l.b16 %v1294
        %v1369 = vpack.c.b16 %v1368, %v1368
        %1370 = vrot.lane.b32.xlu0 %v1369, 120
        %v1371 = vpop.permute.xlu0 %1370
        %1372 = vrot.lane.b32.xlu0 %v1345, 120
        %v1373 = vpop.permute.xlu0 %1372
        %v1375 = vsel %vm848, %v1371, 0
        %v1378 = vsel %vm848, %v1373, 0
        %1380 = vmatpush.bf16.xpose.msra.mxu0 0
        %1381 = vmatpush.bf16.xpose.msra.mxu0 0
        %1382 = vmatpush.bf16.xpose.msra.mxu0 0
        %1383 = vmatpush.bf16.xpose.msra.mxu0 0
        %1384 = vmatpush.bf16.xpose.msra.mxu0 0
        %1385 = vmatpush.bf16.xpose.msra.mxu0 0
        %1386 = vmatpush.bf16.xpose.msra.mxu0 0
        %1387 = vmatpush.bf16.xpose.msra.mxu0 %v1378
        %1388 = vmatmul.bf16.gmra.mxu0 %v1375
        %v1389 = vpop.f32.mrf.mxu0
        %v1390 = vadd.f32 0.0, %v1389
        %v1391 = vpop.f32.mrf.mxu0
        %1392 = vdwg.mxu0
        %v1393 = vmul.f32 %v1390, 0.35355338
        %v1394 = vsel %vm1316, -1e+09, %v1393
        %v1395 = vsel %vm848, %v1394, -inf
        %1396 = vmax.xlane.f32.xlu0 %v1395
        %v1397 = vpop.xlane.xlu0 %1396
        %v1398 = vsub.f32 %v1394, %v1397
        %v1399 = vmul.f32 %v1398, 1.442695
        %v1400 = vpow.pop %v1399
        %v1401 = vsel %vm848, %v1400, 0.0
        %1402 = vadd.xlane.f32.xlu0 %v1401
        %v1403 = vpop.xlane.xlu0 %1402
        %v1404 = vrcp.pop %v1403
        %v1405 = vmul.f32 %v1403, %v1404
        %v1406 = vsub.f32 1.0, %v1405
        %v1407 = vmul.f32 %v1404, %v1406
        %v1408 = vadd.f32 %v1404, %v1407
        %vm1409 = vweird.f32 %v1403
        %vm1410 = vweird.f32 %v1404
        %vm1411 = vmor %vm1409, %vm1410
        %v1412 = vsel %vm1411, %v1404, %v1408
        %v1413 = vand.u32 2147483647, %v1403
        %vm1414 = vcmp.eq.f32.partialorder %v1413, 8.507059e+37
        %v1415 = vand.u32 %v1403, 2147483648
        %v1416 = vor.u32 1.1754944e-38, %v1415
        %v1417 = vsel %vm1414, %v1416, %v1412
        %v1418 = vmul.f32 %v1400, %v1417
        %v1419 = vpack.c.bf16 %v1418, %v1418
        %1420 = vrot.lane.b32.xlu0 %v1345, 88
        %v1421 = vpop.permute.xlu0 %1420
        %v1423 = vsel %vm848, %v1419, 0
        %v1426 = vsel %vm901, %v1421, 0
        %1428 = vmatpush.bf16.msra.mxu0 0
        %1429 = vmatpush.bf16.msra.mxu0 0
        %1430 = vmatpush.bf16.msra.mxu0 0
        %1431 = vmatpush.bf16.msra.mxu0 0
        %1432 = vmatpush.bf16.msra.mxu0 0
        %1433 = vmatpush.bf16.msra.mxu0 0
        %1434 = vmatpush.bf16.msra.mxu0 0
        %1435 = vmatpush.bf16.msra.mxu0 %v1426
        %1436 = vmatmul.bf16.gmra.mxu0 %v1423
        %v1437 = vpop.f32.mrf.mxu0
        %v1438 = vadd.f32 0.0, %v1437
        %v1439 = vpop.f32.mrf.mxu0
        %1440 = vdwg.mxu0
        %1441 = vrot.lane.b32.xlu0 %v1369, 112
        %v1442 = vpop.permute.xlu0 %1441
        %1443 = vrot.lane.b32.xlu0 %v1345, 112
        %v1444 = vpop.permute.xlu0 %1443
        %v1446 = vsel %vm848, %v1442, 0
        %v1449 = vsel %vm848, %v1444, 0
        %1451 = vmatpush.bf16.xpose.msra.mxu0 0
        %1452 = vmatpush.bf16.xpose.msra.mxu0 0
        %1453 = vmatpush.bf16.xpose.msra.mxu0 0
        %1454 = vmatpush.bf16.xpose.msra.mxu0 0
        %1455 = vmatpush.bf16.xpose.msra.mxu0 0
        %1456 = vmatpush.bf16.xpose.msra.mxu0 0
        %1457 = vmatpush.bf16.xpose.msra.mxu0 0
        %1458 = vmatpush.bf16.xpose.msra.mxu0 %v1449
        %1459 = vmatmul.bf16.gmra.mxu0 %v1446
        %v1460 = vpop.f32.mrf.mxu0
        %v1461 = vadd.f32 0.0, %v1460
        %v1462 = vpop.f32.mrf.mxu0
        %1463 = vdwg.mxu0
        %v1464 = vmul.f32 %v1461, 0.35355338
        %v1465 = vsel %vm1316, -1e+09, %v1464
        %v1466 = vsel %vm848, %v1465, -inf
        %1467 = vmax.xlane.f32.xlu0 %v1466
        %v1468 = vpop.xlane.xlu0 %1467
        %v1469 = vsub.f32 %v1465, %v1468
        %v1470 = vmul.f32 %v1469, 1.442695
        %v1471 = vpow.pop %v1470
        %v1472 = vsel %vm848, %v1471, 0.0
        %1473 = vadd.xlane.f32.xlu0 %v1472
        %v1474 = vpop.xlane.xlu0 %1473
        %v1475 = vrcp.pop %v1474
        %v1476 = vmul.f32 %v1474, %v1475
        %v1477 = vsub.f32 1.0, %v1476
        %v1478 = vmul.f32 %v1475, %v1477
        %v1479 = vadd.f32 %v1475, %v1478
        %vm1480 = vweird.f32 %v1474
        %vm1481 = vweird.f32 %v1475
        %vm1482 = vmor %vm1480, %vm1481
        %v1483 = vsel %vm1482, %v1475, %v1479
        %v1484 = vand.u32 2147483647, %v1474
        %vm1485 = vcmp.eq.f32.partialorder %v1484, 8.507059e+37
        %v1486 = vand.u32 %v1474, 2147483648
        %v1487 = vor.u32 1.1754944e-38, %v1486
        %v1488 = vsel %vm1485, %v1487, %v1483
        %v1489 = vmul.f32 %v1471, %v1488
        %v1490 = vpack.c.bf16 %v1489, %v1489
        %1491 = vrot.lane.b32.xlu0 %v1345, 80
        %v1492 = vpop.permute.xlu0 %1491
        %v1494 = vsel %vm848, %v1490, 0
        %v1497 = vsel %vm901, %v1492, 0
        %1499 = vmatpush.bf16.msra.mxu0 0
        %1500 = vmatpush.bf16.msra.mxu0 0
        %1501 = vmatpush.bf16.msra.mxu0 0
        %1502 = vmatpush.bf16.msra.mxu0 0
        %1503 = vmatpush.bf16.msra.mxu0 0
        %1504 = vmatpush.bf16.msra.mxu0 0
        %1505 = vmatpush.bf16.msra.mxu0 0
        %1506 = vmatpush.bf16.msra.mxu0 %v1497
        %1507 = vmatmul.bf16.gmra.mxu0 %v1494
        %v1508 = vpop.f32.mrf.mxu0
        %v1509 = vadd.f32 0.0, %v1508
        %v1510 = vpop.f32.mrf.mxu0
        %1511 = vdwg.mxu0
        %1512 = vrot.lane.b32.xlu0 %v1369, 104
        %v1513 = vpop.permute.xlu0 %1512
        %1514 = vrot.lane.b32.xlu0 %v1345, 104
        %v1515 = vpop.permute.xlu0 %1514
        %v1517 = vsel %vm848, %v1513, 0
        %v1520 = vsel %vm848, %v1515, 0
        %1522 = vmatpush.bf16.xpose.msra.mxu0 0
        %1523 = vmatpush.bf16.xpose.msra.mxu0 0
        %1524 = vmatpush.bf16.xpose.msra.mxu0 0
        %1525 = vmatpush.bf16.xpose.msra.mxu0 0
        %1526 = vmatpush.bf16.xpose.msra.mxu0 0
        %1527 = vmatpush.bf16.xpose.msra.mxu0 0
        %1528 = vmatpush.bf16.xpose.msra.mxu0 0
        %1529 = vmatpush.bf16.xpose.msra.mxu0 %v1520
        %1530 = vmatmul.bf16.gmra.mxu0 %v1517
        %v1531 = vpop.f32.mrf.mxu0
        %v1532 = vadd.f32 0.0, %v1531
        %v1533 = vpop.f32.mrf.mxu0
        %1534 = vdwg.mxu0
        %v1535 = vmul.f32 %v1532, 0.35355338
        %v1536 = vsel %vm1316, -1e+09, %v1535
        %v1537 = vsel %vm848, %v1536, -inf
        %1538 = vmax.xlane.f32.xlu0 %v1537
        %v1539 = vpop.xlane.xlu0 %1538
        %v1540 = vsub.f32 %v1536, %v1539
        %v1541 = vmul.f32 %v1540, 1.442695
        %v1542 = vpow.pop %v1541
        %v1543 = vsel %vm848, %v1542, 0.0
        %1544 = vadd.xlane.f32.xlu0 %v1543
        %v1545 = vpop.xlane.xlu0 %1544
        %v1546 = vrcp.pop %v1545
        %v1547 = vmul.f32 %v1545, %v1546
        %v1548 = vsub.f32 1.0, %v1547
        %v1549 = vmul.f32 %v1546, %v1548
        %v1550 = vadd.f32 %v1546, %v1549
        %vm1551 = vweird.f32 %v1545
        %vm1552 = vweird.f32 %v1546
        %vm1553 = vmor %vm1551, %vm1552
        %v1554 = vsel %vm1553, %v1546, %v1550
        %v1555 = vand.u32 2147483647, %v1545
        %vm1556 = vcmp.eq.f32.partialorder %v1555, 8.507059e+37
        %v1557 = vand.u32 %v1545, 2147483648
        %v1558 = vor.u32 1.1754944e-38, %v1557
        %v1559 = vsel %vm1556, %v1558, %v1554
        %v1560 = vmul.f32 %v1542, %v1559
        %v1561 = vpack.c.bf16 %v1560, %v1560
        %1562 = vrot.lane.b32.xlu0 %v1345, 72
        %v1563 = vpop.permute.xlu0 %1562
        %v1565 = vsel %vm848, %v1561, 0
        %v1568 = vsel %vm901, %v1563, 0
        %1570 = vmatpush.bf16.msra.mxu0 0
        %1571 = vmatpush.bf16.msra.mxu0 0
        %1572 = vmatpush.bf16.msra.mxu0 0
        %1573 = vmatpush.bf16.msra.mxu0 0
        %1574 = vmatpush.bf16.msra.mxu0 0
        %1575 = vmatpush.bf16.msra.mxu0 0
        %1576 = vmatpush.bf16.msra.mxu0 0
        %1577 = vmatpush.bf16.msra.mxu0 %v1568
        %1578 = vmatmul.bf16.gmra.mxu0 %v1565
        %v1579 = vpop.f32.mrf.mxu0
        %v1580 = vadd.f32 0.0, %v1579
        %v1581 = vpop.f32.mrf.mxu0
        %1582 = vdwg.mxu0
        %1584 = vrot.lane.b32.xlu0 %v1438, 8
        %v1585 = vpop.permute.xlu0 %1584
        %1588 = vrot.lane.b32.xlu0 %v1509, 16
        %v1589 = vpop.permute.xlu0 %1588
        %1592 = vrot.lane.b32.xlu0 %v1580, 24
        %v1593 = vpop.permute.xlu0 %1592
        %v1595 = vsel %vm848, %v1364, %v1585
        %v1596 = vsel %vm1144, %v1595, %v1589
        %v1597 = vsel %vm1146, %v1596, %v1593
        %v1598 = vpack.c.bf16 %v1597, %v1597
        %v1599 = vld [vmem:[#allocation16] sm:$0xf]
        %v1600 = vld [vmem:[#allocation16 + $0x4] sm:$0xf]
        %v1601 = vld [vmem:[#allocation16 + $0x8] sm:$0xf]
        %v1602 = vld [vmem:[#allocation16 + $0xc] sm:$0xf]
        %v1603 = vld [vmem:[%s13] sm:$0x1]
        %v1605 = vperm.slane %v1603, 0
        %v1611 = vunpack.c.l.b16 %v1599
        %v1612 = vunpack.c.l.b16 %v1600
        %v1613 = vunpack.c.l.b16 %v1601
        %v1614 = vunpack.c.l.b16 %v1602
        %v1615 = vpack.c.b16 %v1612, %v1611
        %v1616 = vpack.c.b16 %v1614, %v1613
        %v1620 = vsel %vm824, %v1598, 0
        %1622 = vmatpush.bf16.msra.mxu0 0
        %1623 = vmatpush.bf16.msra.mxu0 0
        %1624 = vmatpush.bf16.msra.mxu0 0
        %1625 = vmatpush.bf16.msra.mxu0 0
        %1626 = vmatpush.bf16.msra.mxu0 0
        %1627 = vmatpush.bf16.msra.mxu0 0
        %1628 = vmatpush.bf16.msra.mxu0 %v1616
        %1629 = vmatpush.bf16.msra.mxu0 %v1615
        %1630 = vmatmul.bf16.gmra.mxu0 %v1620
        %v1631 = vpop.f32.mrf.mxu0
        %v1632 = vadd.f32 %v1605, %v1631
        %v1633 = vpop.f32.mrf.mxu0
        %1634 = vdwg.mxu0
        %v1635 = vadd.f32 %v1218, %v1632
        %v1636 = vsel %vm824, %v1635, 0.0
        %1637 = vadd.xlane.f32.xlu0 %v1636
        %v1638 = vpop.xlane.xlu0 %1637
        %v1639 = vmul.f32 %v1638, %v1195
        %v1640 = vsub.f32 %v1635, %v1639
        %v1641 = vmul.f32 %v1640, %v1640
        %v1642 = vsel %vm824, %v1641, 0.0
        %1643 = vadd.xlane.f32.xlu0 %v1642
        %v1644 = vpop.xlane.xlu0 %1643
        %v1645 = vmul.f32 %v1644, %v1195
        %v1646 = vadd.f32 %v1645, 1e-05
        %v1647 = vrsqrt.pop %v1646
        %v1648 = vmul.f32 %v1647, %v1646
        %v1649 = vmul.f32 %v1648, %v1647
        %v1650 = vmul.f32 0.5, %v1649
        %v1651 = vsub.f32 1.5, %v1650
        %v1652 = vmul.f32 %v1647, %v1651
        %vm1653 = vweird.f32 %v1646
        %vm1654 = vweird.f32 %v1647
        %vm1655 = vmor %vm1653, %vm1654
        %v1656 = vsel %vm1655, %v1647, %v1652
        %v1657 = vmul.f32 %v1640, %v1656
        %v1658 = vperm.slane %v801, 1
        %v1659 = vmul.f32 %v1657, %v1658
        %v1660 = vperm.slane %v802, 1
        %v1661 = vadd.f32 %v1659, %v1660
        %v1662 = vpack.c.bf16 %v1661, %v1661
        %v1663 = vld [vmem:[#allocation17] sm:$0xf]
        %v1664 = vld [vmem:[#allocation17 + $0x4] sm:$0xf]
        %v1665 = vld [vmem:[#allocation17 + $0x8] sm:$0xf]
        %v1666 = vld [vmem:[#allocation17 + $0xc] sm:$0xf]
        %v1667 = vld [vmem:[%s15] sm:$0x1]
        %v1669 = vperm.slane %v1667, 0
        %v1675 = vunpack.c.l.b16 %v1663
        %v1676 = vunpack.c.l.b16 %v1664
        %v1677 = vunpack.c.l.b16 %v1665
        %v1678 = vunpack.c.l.b16 %v1666
        %v1679 = vpack.c.b16 %v1676, %v1675
        %v1680 = vpack.c.b16 %v1678, %v1677
        %v1684 = vsel %vm824, %v1662, 0
        %1686 = vmatpush.bf16.msra.mxu0 0
        %1687 = vmatpush.bf16.msra.mxu0 0
        %1688 = vmatpush.bf16.msra.mxu0 0
        %1689 = vmatpush.bf16.msra.mxu0 0
        %1690 = vmatpush.bf16.msra.mxu0 0
        %1691 = vmatpush.bf16.msra.mxu0 0
        %1692 = vmatpush.bf16.msra.mxu0 %v1680
        %1693 = vmatpush.bf16.msra.mxu0 %v1679
        %1694 = vmatmul.bf16.gmra.mxu0 %v1684
        %v1695 = vpop.f32.mrf.mxu0
        %v1696 = vadd.f32 %v1669, %v1695
        %v1697 = vpop.f32.mrf.mxu0
        %1698 = vdwg.mxu0
        %v1699 = vmax.f32 %v1696, 0.0
        %v1700 = vpack.c.bf16 %v1699, %v1699
        %v1701 = vld [vmem:[%s16] sm:$0xf]
        %v1702 = vld [vmem:[%s16 + $0x4] sm:$0xf]
        %v1703 = vld [vmem:[%s16 + $0x8] sm:$0xf]
        %v1704 = vld [vmem:[%s16 + $0xc] sm:$0xf]
        %v1705 = vld [vmem:[%s16 + $0x10] sm:$0xf]
        %v1706 = vld [vmem:[%s16 + $0x14] sm:$0xf]
        %v1707 = vld [vmem:[%s16 + $0x18] sm:$0xf]
        %v1708 = vld [vmem:[%s16 + $0x1c] sm:$0xf]
        %v1709 = vld [vmem:[%s17] sm:$0x1]
        %v1711 = vperm.slane %v1709, 0
        %v1721 = vunpack.c.l.b16 %v1701
        %v1722 = vunpack.c.l.b16 %v1702
        %v1723 = vunpack.c.l.b16 %v1703
        %v1724 = vunpack.c.l.b16 %v1704
        %v1725 = vunpack.c.l.b16 %v1705
        %v1726 = vunpack.c.l.b16 %v1706
        %v1727 = vunpack.c.l.b16 %v1707
        %v1728 = vunpack.c.l.b16 %v1708
        %v1729 = vpack.c.b16 %v1722, %v1721
        %v1730 = vpack.c.b16 %v1724, %v1723
        %v1731 = vpack.c.b16 %v1726, %v1725
        %v1732 = vpack.c.b16 %v1728, %v1727
        %vm1737 = vcmask 523264
        %v1739 = vsel %vm1737, %v1700, 0
        %1741 = vmatpush.bf16.msra.mxu0 0
        %1742 = vmatpush.bf16.msra.mxu0 0
        %1743 = vmatpush.bf16.msra.mxu0 0
        %1744 = vmatpush.bf16.msra.mxu0 0
        %1745 = vmatpush.bf16.msra.mxu0 %v1732
        %1746 = vmatpush.bf16.msra.mxu0 %v1731
        %1747 = vmatpush.bf16.msra.mxu0 %v1730
        %1748 = vmatpush.bf16.msra.mxu0 %v1729
        %1749 = vmatmul.bf16.gmra.mxu0 %v1739
        %v1750 = vpop.f32.mrf.mxu0
        %v1751 = vadd.f32 %v1711, %v1750
        %v1752 = vpop.f32.mrf.mxu0
        %1753 = vdwg.mxu0
        %v1754 = vadd.f32 %v1661, %v1751
        %v1755 = vsel %vm824, %v1754, 0.0
        %1756 = vadd.xlane.f32.xlu0 %v1755
        %v1757 = vpop.xlane.xlu0 %1756
        %v1758 = vmul.f32 %v1757, %v1195
        %v1759 = vsub.f32 %v1754, %v1758
        %v1760 = vmul.f32 %v1759, %v1759
        %v1761 = vsel %vm824, %v1760, 0.0
        %1762 = vadd.xlane.f32.xlu0 %v1761
        %v1763 = vpop.xlane.xlu0 %1762
        %v1764 = vmul.f32 %v1763, %v1195
        %v1765 = vadd.f32 %v1764, 1e-05
        %v1766 = vrsqrt.pop %v1765
        %v1767 = vmul.f32 %v1766, %v1765
        %v1768 = vmul.f32 %v1767, %v1766
        %v1769 = vmul.f32 0.5, %v1768
        %v1770 = vsub.f32 1.5, %v1769
        %v1771 = vmul.f32 %v1766, %v1770
        %vm1772 = vweird.f32 %v1765
        %vm1773 = vweird.f32 %v1766
        %vm1774 = vmor %vm1772, %vm1773
        %v1775 = vsel %vm1774, %v1766, %v1771
        %v1776 = vmul.f32 %v1759, %v1775
        %v1777 = vperm.slane %v801, 2
        %v1778 = vmul.f32 %v1776, %v1777
        %v1779 = vperm.slane %v802, 2
        %v1780 = vadd.f32 %v1778, %v1779
        %1781 = vst.msk [vmem:[%s789] sm:$0xff] %vm824, %v1780
        %s1782 = sand.u32 %s478, 1
        %s1783 = scalar_lea.sflag [#allocation4], %s1782
        %s1784 = sand.u32 %s478, 1
        %s1785 = smul.addr %s1784, 8
        %s1786 = scalar_lea.vmem [#allocation19], %s1785
        // Predicated region
        $region141: #{tpu_custom_call.1} parent=99 // pred_check
          %p1787 = pneg %p488
        $region142: #{tpu_custom_call.1} parent=99 // pred_check_branch
          %1789 = sbr.rel (%p1787) target = $region144
        $region143: #{tpu_custom_call.1} parent=99 // pred_region
          %1791 = vsyncadd %s1783, 0
          %s1792 = smul.addr %s40, 8
          %s1793 = scalar_lea.hbm %s20, %s1792
          %s1795 = sshll.u32 %s1786, 4
          %s1796 = int_to_ptr.vmem [resolvable:$true] %s1795
          %s1797 = sshll.u32 %s1793, 4
          %s1798 = int_to_ptr.hbm [resolvable:$true] %s1797
          %1800 = dma.vmem_to_hbm [thread:$0]  %s1796, 128, %s1798, %s1783
        $region144: #{tpu_custom_call.1} parent=99 // pred_fallthru
          _
      $region100: #{tpu_custom_call.1} parent=5 // pred_fallthru
        _
      %p1801 = scmp.le.s32.totalorder 2, %s35
      // Predicated region
      $region145: #{tpu_custom_call.1} parent=5 // pred_check
        %p1802 = pneg %p1801
      $region146: #{tpu_custom_call.1} parent=5 // pred_check_branch
        %1804 = sbr.rel (%p1802) target = $region148
      $region147: #{tpu_custom_call.1} parent=5 // pred_region
        %s1805 = ssub.s32 %s35, 2
        // Predicated region
        $region149: #{tpu_custom_call.1} parent=147 // pred_check
          %p1806 = pneg %p494
        $region150: #{tpu_custom_call.1} parent=147 // pred_check_branch
          %1808 = sbr.rel (%p1806) target = $region152
        $region151: #{tpu_custom_call.1} parent=147 // pred_region
          %s1809 = sand.u32 %s479, 1
          %s1810 = scalar_lea.sflag [#allocation4], %s1809
          %s1811 = sand.u32 %s479, 1
          %s1812 = smul.addr %s1811, 8
          %s1813 = scalar_lea.vmem [#allocation19], %s1812
          %1815 = dma.done %s1810, 128
        $region152: #{tpu_custom_call.1} parent=147 // pred_fallthru
          _
      $region148: #{tpu_custom_call.1} parent=5 // pred_fallthru
        _
    $region6: #{tpu_custom_call.1} parent=1 // loop_footer
      %s39 = sadd.s32 1, %s35
    $region7: #{tpu_custom_call.1} parent=1 // loop_footer_branch
      %34 = sbr.rel target = $region3
    $region8: #{tpu_custom_call.1} parent=1 // loop_exit
      _
    %1816 = vsyncpa [#allocation3], 1
    %s1817 = scalar_lea.sflag [#allocation3], 1
    %1818 = vsyncpa %s1817, 1
    %1819 = vsyncpa [#allocation6], 1
    %1820 = vsyncpa [#allocation9], 1
    %1821 = vsyncpa [#allocation12], 1
    %1822 = vsyncpa [#allocation15], 1
    %1823 = vsyncpa [#allocation18], 1
    %1824 = vsyncpa [#allocation4], 1
    %s1825 = scalar_lea.sflag [#allocation4], 1
    %1826 = vsyncpa %s1825, 1

</llo_original>
